<compile_context>
chip_gen: v6e
topology: v6e:2x2x1
jax: 0.10.0
libtpu: 0.0.40
codegen_flags: <defaults>
</compile_context>

<pallas_src>
import jax
import jax.numpy as jnp
from jax.experimental import pallas as pl
from jax.experimental.pallas import tpu as pltpu

BN_EPS = 1e-5
_INV_SQRT2 = 0.7071067811865476


def _erf_approx(z):
    # Abramowitz & Stegun 7.1.26 rational approximation (max abs err ~1.5e-7),
    # used because lax.erf is not guaranteed to lower inside Mosaic.
    a1, a2, a3, a4, a5 = 0.254829592, -0.284496736, 1.421413741, -1.453152027, 1.061405429
    p = 0.3275911
    az = jnp.abs(z)
    d = 1.0 + p * az
    # EUP approximate reciprocal + one Newton-Raphson step (~2^-16..2^-24 rel. error):
    # cheaper than a full-precision divide once the matmuls are tiny (VPU-bound regime).
    t = pl.reciprocal(d, approx=True)
    t = t * (2.0 - d * t)
    poly = ((((a5 * t + a4) * t + a3) * t + a2) * t + a1) * t
    y = 1.0 - poly * jnp.exp(-az * az)
    return jnp.where(z >= 0.0, y, -y)


def _gelu_exact(x):
    # PyTorch nn.GELU() default (approximate='none'): x * 0.5 * (1 + erf(x/sqrt(2)))
    return 0.5 * x * (1.0 + _erf_approx(x * _INV_SQRT2))


def make_dense_block_kernel(num_layers, c_in, growth, length, b_tile):
    """Builds the fused DenseBlock kernel (layer loop is unrolled at trace time)."""
    w_cols = b_tile * length

    def kernel(x_ref, w_ref, bnb_ref, o_ref):
        # x_ref:   (c_in, b_tile*L)               b_tile batch samples tiled along lanes
        # w_ref:   (num_layers, 3*growth, c_pad)  conv taps stacked along M, zero-padded K
        # bnb_ref: (num_layers, c_pad, 3)         [:, :, 0]=BN scale, 1=BN shift, 2=bias
        # o_ref:   (c_final, b_tile*L)            DenseNet concat buffer (lane-dense slab)
        x = x_ref[...]
        o_ref[0:c_in, :] = x

        # Per-sample boundary masks for the k=3 "same" conv: batch samples repeat every
        # `length` lanes.  Hoisted out of the layer loop.
        lane = jax.lax.broadcasted_iota(jnp.int32, (1, w_cols), 1)
        pos = lane % length
        first_col = pos == 0
        last_col = pos == (length - 1)

        # The growing concat lives in registers as (value, row_offset, rows) chunks.
        # BN+GELU are per-channel, so each layer applies them per chunk and the matmul
        # accumulates chunk-by-chunk: no in-kernel concatenation, no o_ref reload.
        chunks = [(x, 0, c_in)]
        c = c_in
        for i in range(num_layers):
            wl = w_ref[i]                      # (3*growth, c_pad)
            bnbl = bnb_ref[i]                  # (c_pad, 3)
            sc_full = bnbl[:, 0:1]             # (c_pad, 1) folded BN scale
            sh_full = bnbl[:, 1:2]             # (c_pad, 1) folded BN shift
            bias = bnbl[0:growth, 2:3]         # (growth, 1) conv bias

            z = None                           # (3*growth, w_cols) stacked-tap partials
            for (v, off, rows) in chunks:
                a = _gelu_exact(v * sc_full[off:off + rows] + sh_full[off:off + rows])
                zz = jnp.dot(wl[:, off:off + rows], a,
                             preferred_element_type=jnp.float32)
                z = zz if z is None else z + zz

            # Conv1d(k=3, padding=1): taps were stacked along M, so shift the per-tap
            # partials with pltpu.roll (XLU slot) and zero the per-sample wrap columns.
            z0 = z[0:growth]                   # tap k=0: multiplies x[l-1]
            z1 = z[growth:2 * growth]          # tap k=1: multiplies x[l]
            z2 = z[2 * growth:3 * growth]      # tap k=2: multiplies x[l+1]
            y = (jnp.where(first_col, 0.0, pltpu.roll(z0, 1, axis=1))
                 + z1
                 + jnp.where(last_col, 0.0, pltpu.roll(z2, w_cols - 1, axis=1))
                 + bias)                       # (growth, w_cols)

            o_ref[c:c + growth, :] = y.astype(o_ref.dtype)
            chunks.append((y, c, growth))
            c += growth

    return kernel


def fold_dense_block_params(layer_params):
    """Pre-fold BN (eval mode) into (scale, shift), stack the 3 conv taps along the
    output axis and consolidate all layers into TWO arrays (two parameter DMAs instead
    of 3*num_layers sub-KiB ones).  Call ONCE outside the jitted forward path."""
    growth = layer_params[0][4].shape[0]
    c_last = layer_params[-1][0].shape[0]
    c_pad = max(c_last, growth)
    w_list, bnb_list = [], []
    for (gamma, beta, mean, var, w, b) in layer_params:
        c = gamma.shape[0]
        inv = 1.0 / jnp.sqrt(var + BN_EPS)
        scale = gamma * inv
        shift = beta - mean * scale
        wt = jnp.concatenate([w[:, :, 0], w[:, :, 1], w[:, :, 2]], axis=0)  # (3g, c)
        wt = jnp.pad(wt, ((0, 0), (0, c_pad - c)))
        bnb = jnp.zeros((c_pad, 3), jnp.float32)
        bnb = bnb.at[:c, 0].set(scale)
        bnb = bnb.at[:c, 1].set(shift)
        bnb = bnb.at[:growth, 2].set(b)
        w_list.append(wt)
        bnb_list.append(bnb)
    return jnp.stack(w_list), jnp.stack(bnb_list)


def _pick_batch_tile(n, length, c_in, c_final):
    """Lane-widen each grid step (matmul N = b_tile*length) while keeping >= 4 grid
    steps when the batch allows (v7x: 2 TCs, each needs >= 2 steps for pipelining)
    and staying far under the v7x 64 MiB VMEM budget."""
    budget = 8 << 20                                   # double-buffered in+out blocks
    per_sample = 2 * 4 * length * (c_in + c_final)
    cap = int(max(1, min(n, budget // max(per_sample, 1))))
    divisors = [d for d in range(1, n + 1) if n % d == 0 and d <= cap]
    preferred = [d for d in divisors if n // d >= 4]
    pool = preferred if preferred else divisors
    for d in sorted(pool):
        if d * length >= 512:                          # enough lanes to amortize MXU/DMA
            return d
    return max(pool)


def dense_block_pallas(x, wstack, bnb):
    """x: (N, C_in, L) f32; wstack: (num_layers, 3*growth, c_pad); bnb: (num_layers,
    c_pad, 3).  Returns the DenseBlock output (N, C_in + num_layers*growth, L)."""
    n, c_in, length = x.shape
    num_layers, three_g, _ = wstack.shape
    growth = three_g // 3
    c_final = c_in + num_layers * growth

    b_tile = _pick_batch_tile(n, length, c_in, c_final)
    grid = (n // b_tile,)
    w_cols = b_tile * length

    # Lane-major layout: batch tiled along the lane axis so the per-step matmul is
    # (3*growth, c) x (c, b_tile*L) and the output slab is lane-dense.
    x2 = jnp.transpose(x, (1, 0, 2)).reshape(c_in, n * length)

    grid_spec = pltpu.PrefetchScalarGridSpec(
        num_scalar_prefetch=0,
        grid=grid,
        in_specs=[
            pl.BlockSpec((c_in, w_cols), lambda i: (0, i)),
            pl.BlockSpec(wstack.shape, lambda i: (0, 0, 0)),
            pl.BlockSpec(bnb.shape, lambda i: (0, 0, 0)),
        ],
        out_specs=pl.BlockSpec((c_final, w_cols), lambda i: (0, i)),
    )

    # Explicit VMEM limit with headroom (sized for double-buffered in/out + params);
    # well under the v7x 64 MiB per-TC VMEM.
    block_bytes = 4 * w_cols * (c_in + c_final)
    param_bytes = 4 * (wstack.size + bnb.size)
    vmem_limit = int(min(64 << 20, max(8 << 20, 4 * (2 * block_bytes + param_bytes))))

    out2 = pl.pallas_call(
        make_dense_block_kernel(num_layers, c_in, growth, length, b_tile),
        out_shape=jax.ShapeDtypeStruct((c_final, n * length), x.dtype),
        grid_spec=grid_spec,
        compiler_params=pltpu.CompilerParams(
            dimension_semantics=("parallel",),
            vmem_limit_bytes=vmem_limit,
        ),
    )(x2, wstack, bnb)
    # TODO(synk): bf16 MXU operands skipped to keep the 1e-4 f32 tolerance.

    return jnp.transpose(out2.reshape(c_final, n, length), (1, 0, 2))


# ----------------------------- pure-JAX reference -----------------------------
def dense_block_ref(x, layer_params):
    for (gamma, beta, mean, var, w, b) in layer_params:
        inv = 1.0 / jnp.sqrt(var + BN_EPS)
        a = (x - mean[None, :, None]) * inv[None, :, None] * gamma[None, :, None] \
            + beta[None, :, None]
        a = jax.nn.gelu(a, approximate=False)
        y = jax.lax.conv_general_dilated(
            a, w, window_strides=(1,), padding=((1, 1),),
            dimension_numbers=("NCH", "OIH", "NCH"),
        ) + b[None, :, None]
        x = jnp.concatenate([x, y], axis=1)
    return x


def make_params(key, in_channels, num_layers, growth_rate):
    params = []
    channels = in_channels
    for _ in range(num_layers):
        key, k_g, k_b, k_m, k_v, k_w, k_bias = jax.random.split(key, 7)
        gamma = 1.0 + 0.1 * jax.random.normal(k_g, (channels,), jnp.float32)
        beta = 0.1 * jax.random.normal(k_b, (channels,), jnp.float32)
        mean = 0.1 * jax.random.normal(k_m, (channels,), jnp.float32)
        var = 0.5 + jnp.abs(jax.random.normal(k_v, (channels,), jnp.float32))
        fan_in = channels * 3
        w = jax.random.normal(k_w, (growth_rate, channels, 3), jnp.float32) / jnp.sqrt(fan_in)
        b = 0.05 * jax.random.normal(k_bias, (growth_rate,), jnp.float32)
        params.append((gamma, beta, mean, var, w, b))
        channels += growth_rate
    return params


if __name__ == "__main__":
    # Small shapes consistent with the module: batch=2, in_channels=4,
    # num_layers=3, growth_rate=4, sequence length=128 (lane-aligned).
    # C_final = 4 + 3*4 = 16 -> sublane-aligned final slab.
    N, C_IN, L = 2, 4, 128
    NUM_LAYERS, GROWTH = 3, 4

    key = jax.random.PRNGKey(0)
    key, kx = jax.random.split(key)
    x = jax.random.normal(kx, (N, C_IN, L), jnp.float32)
    params = make_params(key, C_IN, NUM_LAYERS, GROWTH)

    # BN fold / tap stacking is hoisted out of the per-call jitted path (inference
    # constants, computed once).
    wstack, bnb = fold_dense_block_params(params)
    wstack = jax.device_put(wstack)
    bnb = jax.device_put(bnb)

    fn = jax.jit(dense_block_pallas)
    out = jax.block_until_ready(fn(x, wstack, bnb))

    ref = dense_block_ref(x, params)
    assert out.shape == (N, C_IN + NUM_LAYERS * GROWTH, L), out.shape
    max_err = float(jnp.max(jnp.abs(out - ref)))
    assert jnp.allclose(out, ref, atol=1e-4, rtol=1e-4), max_err

    print("KERNEL_OK")
</pallas_src>

<mosaic_0001>
module attributes {stable_mosaic.version = 11 : i64} {
  func.func @kernel(%arg0: i32, %arg1: memref<4x256xf32, #tpu.memory_space<vmem>>, %arg2: memref<3x12x12xf32, #tpu.memory_space<vmem>>, %arg3: memref<3x12x3xf32, #tpu.memory_space<vmem>>, %arg4: memref<16x256xf32, #tpu.memory_space<vmem>>) attributes {dimension_semantics = [#tpu.dimension_semantics<parallel>], iteration_bounds = array<i64: 1>, scalar_prefetch = 0 : i64, scratch_operands = 0 : i64, tpu.core_type = #tpu.core_type<tc>, window_params = [{transform_indices = @transform_0, window_bounds = array<i64: 4, 256>}, {pipeline_mode = #tpu.pipeline_mode<synchronous>, transform_indices = @transform_1, window_bounds = array<i64: 3, 12, 12>}, {pipeline_mode = #tpu.pipeline_mode<synchronous>, transform_indices = @transform_2, window_bounds = array<i64: 3, 12, 3>}, {transform_indices = @transform_3, window_bounds = array<i64: 16, 256>}]} {
    %c0 = arith.constant 0 : index
    %c0_0 = arith.constant 0 : index
    %0 = vector.load %arg1[%c0, %c0_0] : memref<4x256xf32, #tpu.memory_space<vmem>>, vector<4x256xf32>
    %c0_1 = arith.constant 0 : index
    %c0_2 = arith.constant 0 : index
    %1 = vector.load %arg4[%c0_1, %c0_2] : memref<16x256xf32, #tpu.memory_space<vmem>>, vector<4x256xf32>
    tpu.vector_store %arg4[%c0_1, %c0_2], %0 {strides = array<i32>} : memref<16x256xf32, #tpu.memory_space<vmem>>, vector<4x256xf32>,
    %2 = tpu.iota {dimensions = array<i32: 1>} : vector<1x256xi32>
    %c128_i32 = arith.constant 128 : i32
    %c0_i32 = arith.constant 0 : i32
    %3 = arith.cmpi eq, %c128_i32, %c0_i32 : i32
    %c1_i32 = arith.constant 1 : i32
    %4 = arith.select %3, %c1_i32, %c128_i32 : i32
    %5 = vector.broadcast %4 : i32 to vector<1x256xi32>
    %6 = arith.remsi %2, %5 : vector<1x256xi32>
    %c0_i32_3 = arith.constant 0 : i32
    %7 = vector.broadcast %c0_i32_3 : i32 to vector<1x256xi32>
    %8 = arith.cmpi ne, %6, %7 : vector<1x256xi32>
    %c0_i32_4 = arith.constant 0 : i32
    %9 = vector.broadcast %c0_i32_4 : i32 to vector<1x256xi32>
    %10 = arith.cmpi slt, %6, %9 : vector<1x256xi32>
    %c0_i32_5 = arith.constant 0 : i32
    %11 = arith.cmpi slt, %4, %c0_i32_5 : i32
    %12 = vector.broadcast %11 : i1 to vector<1x256xi1>
    %13 = vector.broadcast %12 : vector<1x256xi1> to vector<1x256xi1>
    %14 = arith.xori %10, %13 : vector<1x256xi1>
    %15 = arith.andi %14, %8 : vector<1x256xi1>
    %16 = vector.broadcast %4 : i32 to vector<1x256xi32>
    %17 = arith.addi %6, %16 : vector<1x256xi32>
    %18 = arith.select %15, %17, %6 : vector<1x256xi1>, vector<1x256xi32>
    %c0_i32_6 = arith.constant 0 : i32
    %19 = vector.broadcast %c0_i32_6 : i32 to vector<1x256xi32>
    %20 = arith.cmpi eq, %18, %19 : vector<1x256xi32>
    %c127_i32 = arith.constant 127 : i32
    %21 = vector.broadcast %c127_i32 : i32 to vector<1x256xi32>
    %22 = arith.cmpi eq, %18, %21 : vector<1x256xi32>
    %c0_7 = arith.constant 0 : index
    %c0_8 = arith.constant 0 : index
    %c0_9 = arith.constant 0 : index
    %23 = vector.load %arg2[%c0_7, %c0_8, %c0_9] : memref<3x12x12xf32, #tpu.memory_space<vmem>>, vector<1x12x12xf32>
    %24 = vector.shape_cast %23 : vector<1x12x12xf32> to vector<12x12xf32>
    %c0_10 = arith.constant 0 : index
    %c0_11 = arith.constant 0 : index
    %c0_12 = arith.constant 0 : index
    %25 = vector.load %arg3[%c0_10, %c0_11, %c0_12] : memref<3x12x3xf32, #tpu.memory_space<vmem>>, vector<1x12x3xf32>
    %26 = vector.shape_cast %25 : vector<1x12x3xf32> to vector<12x3xf32>
    %27 = vector.extract_strided_slice %26 {offsets = [0, 0], sizes = [12, 1], strides = [1, 1]} : vector<12x3xf32> to vector<12x1xf32>
    %28 = vector.extract_strided_slice %26 {offsets = [0, 1], sizes = [12, 1], strides = [1, 1]} : vector<12x3xf32> to vector<12x1xf32>
    %29 = vector.extract_strided_slice %26 {offsets = [0, 2], sizes = [4, 1], strides = [1, 1]} : vector<12x3xf32> to vector<4x1xf32>
    %30 = vector.extract_strided_slice %27 {offsets = [0, 0], sizes = [4, 1], strides = [1, 1]} : vector<12x1xf32> to vector<4x1xf32>
    %31 = vector.broadcast %30 : vector<4x1xf32> to vector<4x256xf32>
    %32 = arith.mulf %0, %31 : vector<4x256xf32>
    %33 = vector.extract_strided_slice %28 {offsets = [0, 0], sizes = [4, 1], strides = [1, 1]} : vector<12x1xf32> to vector<4x1xf32>
    %34 = vector.broadcast %33 : vector<4x1xf32> to vector<4x256xf32>
    %35 = arith.addf %32, %34 : vector<4x256xf32>
    %cst = arith.constant 5.000000e-01 : f32
    %36 = vector.broadcast %cst : f32 to vector<4x256xf32>
    %37 = arith.mulf %36, %35 : vector<4x256xf32>
    %cst_13 = arith.constant 0.707106769 : f32
    %38 = vector.broadcast %cst_13 : f32 to vector<4x256xf32>
    %39 = arith.mulf %35, %38 : vector<4x256xf32>
    %40 = math.absf %39 : vector<4x256xf32>
    %cst_14 = arith.constant 0.327591091 : f32
    %41 = vector.broadcast %cst_14 : f32 to vector<4x256xf32>
    %42 = arith.mulf %41, %40 : vector<4x256xf32>
    %cst_15 = arith.constant 1.000000e+00 : f32
    %43 = vector.broadcast %cst_15 : f32 to vector<4x256xf32>
    %44 = arith.addf %43, %42 : vector<4x256xf32>
    %45 = tpu.reciprocal %44 {approx = true} : vector<4x256xf32> -> vector<4x256xf32>
    %46 = arith.mulf %44, %45 : vector<4x256xf32>
    %cst_16 = arith.constant 2.000000e+00 : f32
    %47 = vector.broadcast %cst_16 : f32 to vector<4x256xf32>
    %48 = arith.subf %47, %46 : vector<4x256xf32>
    %49 = arith.mulf %45, %48 : vector<4x256xf32>
    %cst_17 = arith.constant 1.06140542 : f32
    %50 = vector.broadcast %cst_17 : f32 to vector<4x256xf32>
    %51 = arith.mulf %50, %49 : vector<4x256xf32>
    %cst_18 = arith.constant -1.45315206 : f32
    %52 = vector.broadcast %cst_18 : f32 to vector<4x256xf32>
    %53 = arith.addf %51, %52 : vector<4x256xf32>
    %54 = arith.mulf %53, %49 : vector<4x256xf32>
    %cst_19 = arith.constant 1.42141378 : f32
    %55 = vector.broadcast %cst_19 : f32 to vector<4x256xf32>
    %56 = arith.addf %54, %55 : vector<4x256xf32>
    %57 = arith.mulf %56, %49 : vector<4x256xf32>
    %cst_20 = arith.constant -0.284496725 : f32
    %58 = vector.broadcast %cst_20 : f32 to vector<4x256xf32>
    %59 = arith.addf %57, %58 : vector<4x256xf32>
    %60 = arith.mulf %59, %49 : vector<4x256xf32>
    %cst_21 = arith.constant 0.254829586 : f32
    %61 = vector.broadcast %cst_21 : f32 to vector<4x256xf32>
    %62 = arith.addf %60, %61 : vector<4x256xf32>
    %63 = arith.mulf %62, %49 : vector<4x256xf32>
    %cst_22 = arith.constant 0.000000e+00 : f32
    %64 = vector.broadcast %cst_22 : f32 to vector<4x256xf32>
    %65 = arith.subf %64, %40 : vector<4x256xf32>
    %66 = arith.mulf %65, %40 : vector<4x256xf32>
    %67 = math.exp %66 : vector<4x256xf32>
    %68 = arith.mulf %63, %67 : vector<4x256xf32>
    %cst_23 = arith.constant 1.000000e+00 : f32
    %69 = vector.broadcast %cst_23 : f32 to vector<4x256xf32>
    %70 = arith.subf %69, %68 : vector<4x256xf32>
    %cst_24 = arith.constant 0.000000e+00 : f32
    %71 = vector.broadcast %cst_24 : f32 to vector<4x256xf32>
    %72 = arith.cmpf oge, %39, %71 : vector<4x256xf32>
    %cst_25 = arith.constant 0.000000e+00 : f32
    %73 = vector.broadcast %cst_25 : f32 to vector<4x256xf32>
    %74 = arith.subf %73, %70 : vector<4x256xf32>
    %75 = arith.select %72, %70, %74 : vector<4x256xi1>, vector<4x256xf32>
    %cst_26 = arith.constant 1.000000e+00 : f32
    %76 = vector.broadcast %cst_26 : f32 to vector<4x256xf32>
    %77 = arith.addf %76, %75 : vector<4x256xf32>
    %78 = arith.mulf %37, %77 : vector<4x256xf32>
    %79 = vector.extract_strided_slice %24 {offsets = [0, 0], sizes = [12, 4], strides = [1, 1]} : vector<12x12xf32> to vector<12x4xf32>
    %cst_27 = arith.constant dense<0.000000e+00> : vector<12x256xf32>
    %80 = tpu.matmul %79, %78, %cst_27 {dimension_numbers = #tpu.dot_dimension_numbers<[1], [0], [0], [1], [0, 0, 1, 1], [], []>} : vector<12x4xf32>, vector<4x256xf32>, vector<12x256xf32> -> vector<12x256xf32>
    %81 = vector.extract_strided_slice %80 {offsets = [0, 0], sizes = [4, 256], strides = [1, 1]} : vector<12x256xf32> to vector<4x256xf32>
    %82 = vector.extract_strided_slice %80 {offsets = [4, 0], sizes = [4, 256], strides = [1, 1]} : vector<12x256xf32> to vector<4x256xf32>
    %83 = vector.extract_strided_slice %80 {offsets = [8, 0], sizes = [4, 256], strides = [1, 1]} : vector<12x256xf32> to vector<4x256xf32>
    %c1_i32_28 = arith.constant 1 : i32
    %84 = tpu.dynamic_rotate %81 by %c1_i32_28 dim 1 : vector<4x256xf32>, i32 -> vector<4x256xf32>
    %cst_29 = arith.constant 0.000000e+00 : f32
    %85 = vector.shape_cast %20 : vector<1x256xi1> to vector<1x256xi1>
    %86 = vector.broadcast %85 : vector<1x256xi1> to vector<4x256xi1>
    %87 = vector.broadcast %cst_29 : f32 to vector<4x256xf32>
    %88 = arith.select %86, %87, %84 : vector<4x256xi1>, vector<4x256xf32>
    %89 = arith.addf %88, %82 : vector<4x256xf32>
    %c255_i32 = arith.constant 255 : i32
    %90 = tpu.dynamic_rotate %83 by %c255_i32 dim 1 : vector<4x256xf32>, i32 -> vector<4x256xf32>
    %cst_30 = arith.constant 0.000000e+00 : f32
    %91 = vector.shape_cast %22 : vector<1x256xi1> to vector<1x256xi1>
    %92 = vector.broadcast %91 : vector<1x256xi1> to vector<4x256xi1>
    %93 = vector.broadcast %cst_30 : f32 to vector<4x256xf32>
    %94 = arith.select %92, %93, %90 : vector<4x256xi1>, vector<4x256xf32>
    %95 = arith.addf %89, %94 : vector<4x256xf32>
    %96 = vector.broadcast %29 : vector<4x1xf32> to vector<4x256xf32>
    %97 = arith.addf %95, %96 : vector<4x256xf32>
    %c4 = arith.constant 4 : index
    %c0_31 = arith.constant 0 : index
    %98 = vector.load %arg4[%c4, %c0_31] : memref<16x256xf32, #tpu.memory_space<vmem>>, vector<4x256xf32>
    tpu.vector_store %arg4[%c4, %c0_31], %97 {strides = array<i32>} : memref<16x256xf32, #tpu.memory_space<vmem>>, vector<4x256xf32>,
    %c1 = arith.constant 1 : index
    %c0_32 = arith.constant 0 : index
    %c0_33 = arith.constant 0 : index
    %99 = vector.load %arg2[%c1, %c0_32, %c0_33] : memref<3x12x12xf32, #tpu.memory_space<vmem>>, vector<1x12x12xf32>
    %100 = vector.shape_cast %99 : vector<1x12x12xf32> to vector<12x12xf32>
    %c1_34 = arith.constant 1 : index
    %c0_35 = arith.constant 0 : index
    %c0_36 = arith.constant 0 : index
    %101 = vector.load %arg3[%c1_34, %c0_35, %c0_36] : memref<3x12x3xf32, #tpu.memory_space<vmem>>, vector<1x12x3xf32>
    %102 = vector.shape_cast %101 : vector<1x12x3xf32> to vector<12x3xf32>
    %103 = vector.extract_strided_slice %102 {offsets = [0, 0], sizes = [12, 1], strides = [1, 1]} : vector<12x3xf32> to vector<12x1xf32>
    %104 = vector.extract_strided_slice %102 {offsets = [0, 1], sizes = [12, 1], strides = [1, 1]} : vector<12x3xf32> to vector<12x1xf32>
    %105 = vector.extract_strided_slice %102 {offsets = [0, 2], sizes = [4, 1], strides = [1, 1]} : vector<12x3xf32> to vector<4x1xf32>
    %106 = vector.extract_strided_slice %103 {offsets = [0, 0], sizes = [4, 1], strides = [1, 1]} : vector<12x1xf32> to vector<4x1xf32>
    %107 = vector.broadcast %106 : vector<4x1xf32> to vector<4x256xf32>
    %108 = arith.mulf %0, %107 : vector<4x256xf32>
    %109 = vector.extract_strided_slice %104 {offsets = [0, 0], sizes = [4, 1], strides = [1, 1]} : vector<12x1xf32> to vector<4x1xf32>
    %110 = vector.broadcast %109 : vector<4x1xf32> to vector<4x256xf32>
    %111 = arith.addf %108, %110 : vector<4x256xf32>
    %cst_37 = arith.constant 5.000000e-01 : f32
    %112 = vector.broadcast %cst_37 : f32 to vector<4x256xf32>
    %113 = arith.mulf %112, %111 : vector<4x256xf32>
    %cst_38 = arith.constant 0.707106769 : f32
    %114 = vector.broadcast %cst_38 : f32 to vector<4x256xf32>
    %115 = arith.mulf %111, %114 : vector<4x256xf32>
    %116 = math.absf %115 : vector<4x256xf32>
    %cst_39 = arith.constant 0.327591091 : f32
    %117 = vector.broadcast %cst_39 : f32 to vector<4x256xf32>
    %118 = arith.mulf %117, %116 : vector<4x256xf32>
    %cst_40 = arith.constant 1.000000e+00 : f32
    %119 = vector.broadcast %cst_40 : f32 to vector<4x256xf32>
    %120 = arith.addf %119, %118 : vector<4x256xf32>
    %121 = tpu.reciprocal %120 {approx = true} : vector<4x256xf32> -> vector<4x256xf32>
    %122 = arith.mulf %120, %121 : vector<4x256xf32>
    %cst_41 = arith.constant 2.000000e+00 : f32
    %123 = vector.broadcast %cst_41 : f32 to vector<4x256xf32>
    %124 = arith.subf %123, %122 : vector<4x256xf32>
    %125 = arith.mulf %121, %124 : vector<4x256xf32>
    %cst_42 = arith.constant 1.06140542 : f32
    %126 = vector.broadcast %cst_42 : f32 to vector<4x256xf32>
    %127 = arith.mulf %126, %125 : vector<4x256xf32>
    %cst_43 = arith.constant -1.45315206 : f32
    %128 = vector.broadcast %cst_43 : f32 to vector<4x256xf32>
    %129 = arith.addf %127, %128 : vector<4x256xf32>
    %130 = arith.mulf %129, %125 : vector<4x256xf32>
    %cst_44 = arith.constant 1.42141378 : f32
    %131 = vector.broadcast %cst_44 : f32 to vector<4x256xf32>
    %132 = arith.addf %130, %131 : vector<4x256xf32>
    %133 = arith.mulf %132, %125 : vector<4x256xf32>
    %cst_45 = arith.constant -0.284496725 : f32
    %134 = vector.broadcast %cst_45 : f32 to vector<4x256xf32>
    %135 = arith.addf %133, %134 : vector<4x256xf32>
    %136 = arith.mulf %135, %125 : vector<4x256xf32>
    %cst_46 = arith.constant 0.254829586 : f32
    %137 = vector.broadcast %cst_46 : f32 to vector<4x256xf32>
    %138 = arith.addf %136, %137 : vector<4x256xf32>
    %139 = arith.mulf %138, %125 : vector<4x256xf32>
    %cst_47 = arith.constant 0.000000e+00 : f32
    %140 = vector.broadcast %cst_47 : f32 to vector<4x256xf32>
    %141 = arith.subf %140, %116 : vector<4x256xf32>
    %142 = arith.mulf %141, %116 : vector<4x256xf32>
    %143 = math.exp %142 : vector<4x256xf32>
    %144 = arith.mulf %139, %143 : vector<4x256xf32>
    %cst_48 = arith.constant 1.000000e+00 : f32
    %145 = vector.broadcast %cst_48 : f32 to vector<4x256xf32>
    %146 = arith.subf %145, %144 : vector<4x256xf32>
    %cst_49 = arith.constant 0.000000e+00 : f32
    %147 = vector.broadcast %cst_49 : f32 to vector<4x256xf32>
    %148 = arith.cmpf oge, %115, %147 : vector<4x256xf32>
    %cst_50 = arith.constant 0.000000e+00 : f32
    %149 = vector.broadcast %cst_50 : f32 to vector<4x256xf32>
    %150 = arith.subf %149, %146 : vector<4x256xf32>
    %151 = arith.select %148, %146, %150 : vector<4x256xi1>, vector<4x256xf32>
    %cst_51 = arith.constant 1.000000e+00 : f32
    %152 = vector.broadcast %cst_51 : f32 to vector<4x256xf32>
    %153 = arith.addf %152, %151 : vector<4x256xf32>
    %154 = arith.mulf %113, %153 : vector<4x256xf32>
    %155 = vector.extract_strided_slice %100 {offsets = [0, 0], sizes = [12, 4], strides = [1, 1]} : vector<12x12xf32> to vector<12x4xf32>
    %cst_52 = arith.constant dense<0.000000e+00> : vector<12x256xf32>
    %156 = tpu.matmul %155, %154, %cst_52 {dimension_numbers = #tpu.dot_dimension_numbers<[1], [0], [0], [1], [0, 0, 1, 1], [], []>} : vector<12x4xf32>, vector<4x256xf32>, vector<12x256xf32> -> vector<12x256xf32>
    %157 = vector.extract_strided_slice %103 {offsets = [4, 0], sizes = [4, 1], strides = [1, 1]} : vector<12x1xf32> to vector<4x1xf32>
    %158 = vector.broadcast %157 : vector<4x1xf32> to vector<4x256xf32>
    %159 = arith.mulf %97, %158 : vector<4x256xf32>
    %160 = vector.extract_strided_slice %104 {offsets = [4, 0], sizes = [4, 1], strides = [1, 1]} : vector<12x1xf32> to vector<4x1xf32>
    %161 = vector.broadcast %160 : vector<4x1xf32> to vector<4x256xf32>
    %162 = arith.addf %159, %161 : vector<4x256xf32>
    %cst_53 = arith.constant 5.000000e-01 : f32
    %163 = vector.broadcast %cst_53 : f32 to vector<4x256xf32>
    %164 = arith.mulf %163, %162 : vector<4x256xf32>
    %cst_54 = arith.constant 0.707106769 : f32
    %165 = vector.broadcast %cst_54 : f32 to vector<4x256xf32>
    %166 = arith.mulf %162, %165 : vector<4x256xf32>
    %167 = math.absf %166 : vector<4x256xf32>
    %cst_55 = arith.constant 0.327591091 : f32
    %168 = vector.broadcast %cst_55 : f32 to vector<4x256xf32>
    %169 = arith.mulf %168, %167 : vector<4x256xf32>
    %cst_56 = arith.constant 1.000000e+00 : f32
    %170 = vector.broadcast %cst_56 : f32 to vector<4x256xf32>
    %171 = arith.addf %170, %169 : vector<4x256xf32>
    %172 = tpu.reciprocal %171 {approx = true} : vector<4x256xf32> -> vector<4x256xf32>
    %173 = arith.mulf %171, %172 : vector<4x256xf32>
    %cst_57 = arith.constant 2.000000e+00 : f32
    %174 = vector.broadcast %cst_57 : f32 to vector<4x256xf32>
    %175 = arith.subf %174, %173 : vector<4x256xf32>
    %176 = arith.mulf %172, %175 : vector<4x256xf32>
    %cst_58 = arith.constant 1.06140542 : f32
    %177 = vector.broadcast %cst_58 : f32 to vector<4x256xf32>
    %178 = arith.mulf %177, %176 : vector<4x256xf32>
    %cst_59 = arith.constant -1.45315206 : f32
    %179 = vector.broadcast %cst_59 : f32 to vector<4x256xf32>
    %180 = arith.addf %178, %179 : vector<4x256xf32>
    %181 = arith.mulf %180, %176 : vector<4x256xf32>
    %cst_60 = arith.constant 1.42141378 : f32
    %182 = vector.broadcast %cst_60 : f32 to vector<4x256xf32>
    %183 = arith.addf %181, %182 : vector<4x256xf32>
    %184 = arith.mulf %183, %176 : vector<4x256xf32>
    %cst_61 = arith.constant -0.284496725 : f32
    %185 = vector.broadcast %cst_61 : f32 to vector<4x256xf32>
    %186 = arith.addf %184, %185 : vector<4x256xf32>
    %187 = arith.mulf %186, %176 : vector<4x256xf32>
    %cst_62 = arith.constant 0.254829586 : f32
    %188 = vector.broadcast %cst_62 : f32 to vector<4x256xf32>
    %189 = arith.addf %187, %188 : vector<4x256xf32>
    %190 = arith.mulf %189, %176 : vector<4x256xf32>
    %cst_63 = arith.constant 0.000000e+00 : f32
    %191 = vector.broadcast %cst_63 : f32 to vector<4x256xf32>
    %192 = arith.subf %191, %167 : vector<4x256xf32>
    %193 = arith.mulf %192, %167 : vector<4x256xf32>
    %194 = math.exp %193 : vector<4x256xf32>
    %195 = arith.mulf %190, %194 : vector<4x256xf32>
    %cst_64 = arith.constant 1.000000e+00 : f32
    %196 = vector.broadcast %cst_64 : f32 to vector<4x256xf32>
    %197 = arith.subf %196, %195 : vector<4x256xf32>
    %cst_65 = arith.constant 0.000000e+00 : f32
    %198 = vector.broadcast %cst_65 : f32 to vector<4x256xf32>
    %199 = arith.cmpf oge, %166, %198 : vector<4x256xf32>
    %cst_66 = arith.constant 0.000000e+00 : f32
    %200 = vector.broadcast %cst_66 : f32 to vector<4x256xf32>
    %201 = arith.subf %200, %197 : vector<4x256xf32>
    %202 = arith.select %199, %197, %201 : vector<4x256xi1>, vector<4x256xf32>
    %cst_67 = arith.constant 1.000000e+00 : f32
    %203 = vector.broadcast %cst_67 : f32 to vector<4x256xf32>
    %204 = arith.addf %203, %202 : vector<4x256xf32>
    %205 = arith.mulf %164, %204 : vector<4x256xf32>
    %206 = vector.extract_strided_slice %100 {offsets = [0, 4], sizes = [12, 4], strides = [1, 1]} : vector<12x12xf32> to vector<12x4xf32>
    %cst_68 = arith.constant dense<0.000000e+00> : vector<12x256xf32>
    %207 = tpu.matmul %206, %205, %cst_68 {dimension_numbers = #tpu.dot_dimension_numbers<[1], [0], [0], [1], [0, 0, 1, 1], [], []>} : vector<12x4xf32>, vector<4x256xf32>, vector<12x256xf32> -> vector<12x256xf32>
    %208 = arith.addf %156, %207 : vector<12x256xf32>
    %209 = vector.extract_strided_slice %208 {offsets = [0, 0], sizes = [4, 256], strides = [1, 1]} : vector<12x256xf32> to vector<4x256xf32>
    %210 = vector.extract_strided_slice %208 {offsets = [4, 0], sizes = [4, 256], strides = [1, 1]} : vector<12x256xf32> to vector<4x256xf32>
    %211 = vector.extract_strided_slice %208 {offsets = [8, 0], sizes = [4, 256], strides = [1, 1]} : vector<12x256xf32> to vector<4x256xf32>
    %c1_i32_69 = arith.constant 1 : i32
    %212 = tpu.dynamic_rotate %209 by %c1_i32_69 dim 1 : vector<4x256xf32>, i32 -> vector<4x256xf32>
    %cst_70 = arith.constant 0.000000e+00 : f32
    %213 = vector.shape_cast %20 : vector<1x256xi1> to vector<1x256xi1>
    %214 = vector.broadcast %213 : vector<1x256xi1> to vector<4x256xi1>
    %215 = vector.broadcast %cst_70 : f32 to vector<4x256xf32>
    %216 = arith.select %214, %215, %212 : vector<4x256xi1>, vector<4x256xf32>
    %217 = arith.addf %216, %210 : vector<4x256xf32>
    %c255_i32_71 = arith.constant 255 : i32
    %218 = tpu.dynamic_rotate %211 by %c255_i32_71 dim 1 : vector<4x256xf32>, i32 -> vector<4x256xf32>
    %cst_72 = arith.constant 0.000000e+00 : f32
    %219 = vector.shape_cast %22 : vector<1x256xi1> to vector<1x256xi1>
    %220 = vector.broadcast %219 : vector<1x256xi1> to vector<4x256xi1>
    %221 = vector.broadcast %cst_72 : f32 to vector<4x256xf32>
    %222 = arith.select %220, %221, %218 : vector<4x256xi1>, vector<4x256xf32>
    %223 = arith.addf %217, %222 : vector<4x256xf32>
    %224 = vector.broadcast %105 : vector<4x1xf32> to vector<4x256xf32>
    %225 = arith.addf %223, %224 : vector<4x256xf32>
    %c8 = arith.constant 8 : index
    %c0_73 = arith.constant 0 : index
    %226 = vector.load %arg4[%c8, %c0_73] : memref<16x256xf32, #tpu.memory_space<vmem>>, vector<4x256xf32>
    tpu.vector_store %arg4[%c8, %c0_73], %225 {strides = array<i32>} : memref<16x256xf32, #tpu.memory_space<vmem>>, vector<4x256xf32>,
    %c2 = arith.constant 2 : index
    %c0_74 = arith.constant 0 : index
    %c0_75 = arith.constant 0 : index
    %227 = vector.load %arg2[%c2, %c0_74, %c0_75] : memref<3x12x12xf32, #tpu.memory_space<vmem>>, vector<1x12x12xf32>
    %228 = vector.shape_cast %227 : vector<1x12x12xf32> to vector<12x12xf32>
    %c2_76 = arith.constant 2 : index
    %c0_77 = arith.constant 0 : index
    %c0_78 = arith.constant 0 : index
    %229 = vector.load %arg3[%c2_76, %c0_77, %c0_78] : memref<3x12x3xf32, #tpu.memory_space<vmem>>, vector<1x12x3xf32>
    %230 = vector.shape_cast %229 : vector<1x12x3xf32> to vector<12x3xf32>
    %231 = vector.extract_strided_slice %230 {offsets = [0, 0], sizes = [12, 1], strides = [1, 1]} : vector<12x3xf32> to vector<12x1xf32>
    %232 = vector.extract_strided_slice %230 {offsets = [0, 1], sizes = [12, 1], strides = [1, 1]} : vector<12x3xf32> to vector<12x1xf32>
    %233 = vector.extract_strided_slice %230 {offsets = [0, 2], sizes = [4, 1], strides = [1, 1]} : vector<12x3xf32> to vector<4x1xf32>
    %234 = vector.extract_strided_slice %231 {offsets = [0, 0], sizes = [4, 1], strides = [1, 1]} : vector<12x1xf32> to vector<4x1xf32>
    %235 = vector.broadcast %234 : vector<4x1xf32> to vector<4x256xf32>
    %236 = arith.mulf %0, %235 : vector<4x256xf32>
    %237 = vector.extract_strided_slice %232 {offsets = [0, 0], sizes = [4, 1], strides = [1, 1]} : vector<12x1xf32> to vector<4x1xf32>
    %238 = vector.broadcast %237 : vector<4x1xf32> to vector<4x256xf32>
    %239 = arith.addf %236, %238 : vector<4x256xf32>
    %cst_79 = arith.constant 5.000000e-01 : f32
    %240 = vector.broadcast %cst_79 : f32 to vector<4x256xf32>
    %241 = arith.mulf %240, %239 : vector<4x256xf32>
    %cst_80 = arith.constant 0.707106769 : f32
    %242 = vector.broadcast %cst_80 : f32 to vector<4x256xf32>
    %243 = arith.mulf %239, %242 : vector<4x256xf32>
    %244 = math.absf %243 : vector<4x256xf32>
    %cst_81 = arith.constant 0.327591091 : f32
    %245 = vector.broadcast %cst_81 : f32 to vector<4x256xf32>
    %246 = arith.mulf %245, %244 : vector<4x256xf32>
    %cst_82 = arith.constant 1.000000e+00 : f32
    %247 = vector.broadcast %cst_82 : f32 to vector<4x256xf32>
    %248 = arith.addf %247, %246 : vector<4x256xf32>
    %249 = tpu.reciprocal %248 {approx = true} : vector<4x256xf32> -> vector<4x256xf32>
    %250 = arith.mulf %248, %249 : vector<4x256xf32>
    %cst_83 = arith.constant 2.000000e+00 : f32
    %251 = vector.broadcast %cst_83 : f32 to vector<4x256xf32>
    %252 = arith.subf %251, %250 : vector<4x256xf32>
    %253 = arith.mulf %249, %252 : vector<4x256xf32>
    %cst_84 = arith.constant 1.06140542 : f32
    %254 = vector.broadcast %cst_84 : f32 to vector<4x256xf32>
    %255 = arith.mulf %254, %253 : vector<4x256xf32>
    %cst_85 = arith.constant -1.45315206 : f32
    %256 = vector.broadcast %cst_85 : f32 to vector<4x256xf32>
    %257 = arith.addf %255, %256 : vector<4x256xf32>
    %258 = arith.mulf %257, %253 : vector<4x256xf32>
    %cst_86 = arith.constant 1.42141378 : f32
    %259 = vector.broadcast %cst_86 : f32 to vector<4x256xf32>
    %260 = arith.addf %258, %259 : vector<4x256xf32>
    %261 = arith.mulf %260, %253 : vector<4x256xf32>
    %cst_87 = arith.constant -0.284496725 : f32
    %262 = vector.broadcast %cst_87 : f32 to vector<4x256xf32>
    %263 = arith.addf %261, %262 : vector<4x256xf32>
    %264 = arith.mulf %263, %253 : vector<4x256xf32>
    %cst_88 = arith.constant 0.254829586 : f32
    %265 = vector.broadcast %cst_88 : f32 to vector<4x256xf32>
    %266 = arith.addf %264, %265 : vector<4x256xf32>
    %267 = arith.mulf %266, %253 : vector<4x256xf32>
    %cst_89 = arith.constant 0.000000e+00 : f32
    %268 = vector.broadcast %cst_89 : f32 to vector<4x256xf32>
    %269 = arith.subf %268, %244 : vector<4x256xf32>
    %270 = arith.mulf %269, %244 : vector<4x256xf32>
    %271 = math.exp %270 : vector<4x256xf32>
    %272 = arith.mulf %267, %271 : vector<4x256xf32>
    %cst_90 = arith.constant 1.000000e+00 : f32
    %273 = vector.broadcast %cst_90 : f32 to vector<4x256xf32>
    %274 = arith.subf %273, %272 : vector<4x256xf32>
    %cst_91 = arith.constant 0.000000e+00 : f32
    %275 = vector.broadcast %cst_91 : f32 to vector<4x256xf32>
    %276 = arith.cmpf oge, %243, %275 : vector<4x256xf32>
    %cst_92 = arith.constant 0.000000e+00 : f32
    %277 = vector.broadcast %cst_92 : f32 to vector<4x256xf32>
    %278 = arith.subf %277, %274 : vector<4x256xf32>
    %279 = arith.select %276, %274, %278 : vector<4x256xi1>, vector<4x256xf32>
    %cst_93 = arith.constant 1.000000e+00 : f32
    %280 = vector.broadcast %cst_93 : f32 to vector<4x256xf32>
    %281 = arith.addf %280, %279 : vector<4x256xf32>
    %282 = arith.mulf %241, %281 : vector<4x256xf32>
    %283 = vector.extract_strided_slice %228 {offsets = [0, 0], sizes = [12, 4], strides = [1, 1]} : vector<12x12xf32> to vector<12x4xf32>
    %cst_94 = arith.constant dense<0.000000e+00> : vector<12x256xf32>
    %284 = tpu.matmul %283, %282, %cst_94 {dimension_numbers = #tpu.dot_dimension_numbers<[1], [0], [0], [1], [0, 0, 1, 1], [], []>} : vector<12x4xf32>, vector<4x256xf32>, vector<12x256xf32> -> vector<12x256xf32>
    %285 = vector.extract_strided_slice %231 {offsets = [4, 0], sizes = [4, 1], strides = [1, 1]} : vector<12x1xf32> to vector<4x1xf32>
    %286 = vector.broadcast %285 : vector<4x1xf32> to vector<4x256xf32>
    %287 = arith.mulf %97, %286 : vector<4x256xf32>
    %288 = vector.extract_strided_slice %232 {offsets = [4, 0], sizes = [4, 1], strides = [1, 1]} : vector<12x1xf32> to vector<4x1xf32>
    %289 = vector.broadcast %288 : vector<4x1xf32> to vector<4x256xf32>
    %290 = arith.addf %287, %289 : vector<4x256xf32>
    %cst_95 = arith.constant 5.000000e-01 : f32
    %291 = vector.broadcast %cst_95 : f32 to vector<4x256xf32>
    %292 = arith.mulf %291, %290 : vector<4x256xf32>
    %cst_96 = arith.constant 0.707106769 : f32
    %293 = vector.broadcast %cst_96 : f32 to vector<4x256xf32>
    %294 = arith.mulf %290, %293 : vector<4x256xf32>
    %295 = math.absf %294 : vector<4x256xf32>
    %cst_97 = arith.constant 0.327591091 : f32
    %296 = vector.broadcast %cst_97 : f32 to vector<4x256xf32>
    %297 = arith.mulf %296, %295 : vector<4x256xf32>
    %cst_98 = arith.constant 1.000000e+00 : f32
    %298 = vector.broadcast %cst_98 : f32 to vector<4x256xf32>
    %299 = arith.addf %298, %297 : vector<4x256xf32>
    %300 = tpu.reciprocal %299 {approx = true} : vector<4x256xf32> -> vector<4x256xf32>
    %301 = arith.mulf %299, %300 : vector<4x256xf32>
    %cst_99 = arith.constant 2.000000e+00 : f32
    %302 = vector.broadcast %cst_99 : f32 to vector<4x256xf32>
    %303 = arith.subf %302, %301 : vector<4x256xf32>
    %304 = arith.mulf %300, %303 : vector<4x256xf32>
    %cst_100 = arith.constant 1.06140542 : f32
    %305 = vector.broadcast %cst_100 : f32 to vector<4x256xf32>
    %306 = arith.mulf %305, %304 : vector<4x256xf32>
    %cst_101 = arith.constant -1.45315206 : f32
    %307 = vector.broadcast %cst_101 : f32 to vector<4x256xf32>
    %308 = arith.addf %306, %307 : vector<4x256xf32>
    %309 = arith.mulf %308, %304 : vector<4x256xf32>
    %cst_102 = arith.constant 1.42141378 : f32
    %310 = vector.broadcast %cst_102 : f32 to vector<4x256xf32>
    %311 = arith.addf %309, %310 : vector<4x256xf32>
    %312 = arith.mulf %311, %304 : vector<4x256xf32>
    %cst_103 = arith.constant -0.284496725 : f32
    %313 = vector.broadcast %cst_103 : f32 to vector<4x256xf32>
    %314 = arith.addf %312, %313 : vector<4x256xf32>
    %315 = arith.mulf %314, %304 : vector<4x256xf32>
    %cst_104 = arith.constant 0.254829586 : f32
    %316 = vector.broadcast %cst_104 : f32 to vector<4x256xf32>
    %317 = arith.addf %315, %316 : vector<4x256xf32>
    %318 = arith.mulf %317, %304 : vector<4x256xf32>
    %cst_105 = arith.constant 0.000000e+00 : f32
    %319 = vector.broadcast %cst_105 : f32 to vector<4x256xf32>
    %320 = arith.subf %319, %295 : vector<4x256xf32>
    %321 = arith.mulf %320, %295 : vector<4x256xf32>
    %322 = math.exp %321 : vector<4x256xf32>
    %323 = arith.mulf %318, %322 : vector<4x256xf32>
    %cst_106 = arith.constant 1.000000e+00 : f32
    %324 = vector.broadcast %cst_106 : f32 to vector<4x256xf32>
    %325 = arith.subf %324, %323 : vector<4x256xf32>
    %cst_107 = arith.constant 0.000000e+00 : f32
    %326 = vector.broadcast %cst_107 : f32 to vector<4x256xf32>
    %327 = arith.cmpf oge, %294, %326 : vector<4x256xf32>
    %cst_108 = arith.constant 0.000000e+00 : f32
    %328 = vector.broadcast %cst_108 : f32 to vector<4x256xf32>
    %329 = arith.subf %328, %325 : vector<4x256xf32>
    %330 = arith.select %327, %325, %329 : vector<4x256xi1>, vector<4x256xf32>
    %cst_109 = arith.constant 1.000000e+00 : f32
    %331 = vector.broadcast %cst_109 : f32 to vector<4x256xf32>
    %332 = arith.addf %331, %330 : vector<4x256xf32>
    %333 = arith.mulf %292, %332 : vector<4x256xf32>
    %334 = vector.extract_strided_slice %228 {offsets = [0, 4], sizes = [12, 4], strides = [1, 1]} : vector<12x12xf32> to vector<12x4xf32>
    %cst_110 = arith.constant dense<0.000000e+00> : vector<12x256xf32>
    %335 = tpu.matmul %334, %333, %cst_110 {dimension_numbers = #tpu.dot_dimension_numbers<[1], [0], [0], [1], [0, 0, 1, 1], [], []>} : vector<12x4xf32>, vector<4x256xf32>, vector<12x256xf32> -> vector<12x256xf32>
    %336 = arith.addf %284, %335 : vector<12x256xf32>
    %337 = vector.extract_strided_slice %231 {offsets = [8, 0], sizes = [4, 1], strides = [1, 1]} : vector<12x1xf32> to vector<4x1xf32>
    %338 = vector.broadcast %337 : vector<4x1xf32> to vector<4x256xf32>
    %339 = arith.mulf %225, %338 : vector<4x256xf32>
    %340 = vector.extract_strided_slice %232 {offsets = [8, 0], sizes = [4, 1], strides = [1, 1]} : vector<12x1xf32> to vector<4x1xf32>
    %341 = vector.broadcast %340 : vector<4x1xf32> to vector<4x256xf32>
    %342 = arith.addf %339, %341 : vector<4x256xf32>
    %cst_111 = arith.constant 5.000000e-01 : f32
    %343 = vector.broadcast %cst_111 : f32 to vector<4x256xf32>
    %344 = arith.mulf %343, %342 : vector<4x256xf32>
    %cst_112 = arith.constant 0.707106769 : f32
    %345 = vector.broadcast %cst_112 : f32 to vector<4x256xf32>
    %346 = arith.mulf %342, %345 : vector<4x256xf32>
    %347 = math.absf %346 : vector<4x256xf32>
    %cst_113 = arith.constant 0.327591091 : f32
    %348 = vector.broadcast %cst_113 : f32 to vector<4x256xf32>
    %349 = arith.mulf %348, %347 : vector<4x256xf32>
    %cst_114 = arith.constant 1.000000e+00 : f32
    %350 = vector.broadcast %cst_114 : f32 to vector<4x256xf32>
    %351 = arith.addf %350, %349 : vector<4x256xf32>
    %352 = tpu.reciprocal %351 {approx = true} : vector<4x256xf32> -> vector<4x256xf32>
    %353 = arith.mulf %351, %352 : vector<4x256xf32>
    %cst_115 = arith.constant 2.000000e+00 : f32
    %354 = vector.broadcast %cst_115 : f32 to vector<4x256xf32>
    %355 = arith.subf %354, %353 : vector<4x256xf32>
    %356 = arith.mulf %352, %355 : vector<4x256xf32>
    %cst_116 = arith.constant 1.06140542 : f32
    %357 = vector.broadcast %cst_116 : f32 to vector<4x256xf32>
    %358 = arith.mulf %357, %356 : vector<4x256xf32>
    %cst_117 = arith.constant -1.45315206 : f32
    %359 = vector.broadcast %cst_117 : f32 to vector<4x256xf32>
    %360 = arith.addf %358, %359 : vector<4x256xf32>
    %361 = arith.mulf %360, %356 : vector<4x256xf32>
    %cst_118 = arith.constant 1.42141378 : f32
    %362 = vector.broadcast %cst_118 : f32 to vector<4x256xf32>
    %363 = arith.addf %361, %362 : vector<4x256xf32>
    %364 = arith.mulf %363, %356 : vector<4x256xf32>
    %cst_119 = arith.constant -0.284496725 : f32
    %365 = vector.broadcast %cst_119 : f32 to vector<4x256xf32>
    %366 = arith.addf %364, %365 : vector<4x256xf32>
    %367 = arith.mulf %366, %356 : vector<4x256xf32>
    %cst_120 = arith.constant 0.254829586 : f32
    %368 = vector.broadcast %cst_120 : f32 to vector<4x256xf32>
    %369 = arith.addf %367, %368 : vector<4x256xf32>
    %370 = arith.mulf %369, %356 : vector<4x256xf32>
    %cst_121 = arith.constant 0.000000e+00 : f32
    %371 = vector.broadcast %cst_121 : f32 to vector<4x256xf32>
    %372 = arith.subf %371, %347 : vector<4x256xf32>
    %373 = arith.mulf %372, %347 : vector<4x256xf32>
    %374 = math.exp %373 : vector<4x256xf32>
    %375 = arith.mulf %370, %374 : vector<4x256xf32>
    %cst_122 = arith.constant 1.000000e+00 : f32
    %376 = vector.broadcast %cst_122 : f32 to vector<4x256xf32>
    %377 = arith.subf %376, %375 : vector<4x256xf32>
    %cst_123 = arith.constant 0.000000e+00 : f32
    %378 = vector.broadcast %cst_123 : f32 to vector<4x256xf32>
    %379 = arith.cmpf oge, %346, %378 : vector<4x256xf32>
    %cst_124 = arith.constant 0.000000e+00 : f32
    %380 = vector.broadcast %cst_124 : f32 to vector<4x256xf32>
    %381 = arith.subf %380, %377 : vector<4x256xf32>
    %382 = arith.select %379, %377, %381 : vector<4x256xi1>, vector<4x256xf32>
    %cst_125 = arith.constant 1.000000e+00 : f32
    %383 = vector.broadcast %cst_125 : f32 to vector<4x256xf32>
    %384 = arith.addf %383, %382 : vector<4x256xf32>
    %385 = arith.mulf %344, %384 : vector<4x256xf32>
    %386 = vector.extract_strided_slice %228 {offsets = [0, 8], sizes = [12, 4], strides = [1, 1]} : vector<12x12xf32> to vector<12x4xf32>
    %cst_126 = arith.constant dense<0.000000e+00> : vector<12x256xf32>
    %387 = tpu.matmul %386, %385, %cst_126 {dimension_numbers = #tpu.dot_dimension_numbers<[1], [0], [0], [1], [0, 0, 1, 1], [], []>} : vector<12x4xf32>, vector<4x256xf32>, vector<12x256xf32> -> vector<12x256xf32>
    %388 = arith.addf %336, %387 : vector<12x256xf32>
    %389 = vector.extract_strided_slice %388 {offsets = [0, 0], sizes = [4, 256], strides = [1, 1]} : vector<12x256xf32> to vector<4x256xf32>
    %390 = vector.extract_strided_slice %388 {offsets = [4, 0], sizes = [4, 256], strides = [1, 1]} : vector<12x256xf32> to vector<4x256xf32>
    %391 = vector.extract_strided_slice %388 {offsets = [8, 0], sizes = [4, 256], strides = [1, 1]} : vector<12x256xf32> to vector<4x256xf32>
    %c1_i32_127 = arith.constant 1 : i32
    %392 = tpu.dynamic_rotate %389 by %c1_i32_127 dim 1 : vector<4x256xf32>, i32 -> vector<4x256xf32>
    %cst_128 = arith.constant 0.000000e+00 : f32
    %393 = vector.shape_cast %20 : vector<1x256xi1> to vector<1x256xi1>
    %394 = vector.broadcast %393 : vector<1x256xi1> to vector<4x256xi1>
    %395 = vector.broadcast %cst_128 : f32 to vector<4x256xf32>
    %396 = arith.select %394, %395, %392 : vector<4x256xi1>, vector<4x256xf32>
    %397 = arith.addf %396, %390 : vector<4x256xf32>
    %c255_i32_129 = arith.constant 255 : i32
    %398 = tpu.dynamic_rotate %391 by %c255_i32_129 dim 1 : vector<4x256xf32>, i32 -> vector<4x256xf32>
    %cst_130 = arith.constant 0.000000e+00 : f32
    %399 = vector.shape_cast %22 : vector<1x256xi1> to vector<1x256xi1>
    %400 = vector.broadcast %399 : vector<1x256xi1> to vector<4x256xi1>
    %401 = vector.broadcast %cst_130 : f32 to vector<4x256xf32>
    %402 = arith.select %400, %401, %398 : vector<4x256xi1>, vector<4x256xf32>
    %403 = arith.addf %397, %402 : vector<4x256xf32>
    %404 = vector.broadcast %233 : vector<4x1xf32> to vector<4x256xf32>
    %405 = arith.addf %403, %404 : vector<4x256xf32>
    %c12 = arith.constant 12 : index
    %c0_131 = arith.constant 0 : index
    %406 = vector.load %arg4[%c12, %c0_131] : memref<16x256xf32, #tpu.memory_space<vmem>>, vector<4x256xf32>
    tpu.vector_store %arg4[%c12, %c0_131], %405 {strides = array<i32>} : memref<16x256xf32, #tpu.memory_space<vmem>>, vector<4x256xf32>,
    return
  }
  func.func @transform_0(%arg0: i32) -> (i32, i32) {
    %c0_i32 = arith.constant 0 : i32
    %c0_i32_0 = arith.constant 0 : i32
    return %c0_i32, %arg0 : i32, i32
  }
  func.func @transform_1(%arg0: i32) -> (i32, i32, i32) {
    %c0_i32 = arith.constant 0 : i32
    %c0_i32_0 = arith.constant 0 : i32
    %c0_i32_1 = arith.constant 0 : i32
    %c0_i32_2 = arith.constant 0 : i32
    return %c0_i32, %c0_i32_0, %c0_i32_1 : i32, i32, i32
  }
  func.func @transform_2(%arg0: i32) -> (i32, i32, i32) {
    %c0_i32 = arith.constant 0 : i32
    %c0_i32_0 = arith.constant 0 : i32
    %c0_i32_1 = arith.constant 0 : i32
    %c0_i32_2 = arith.constant 0 : i32
    return %c0_i32, %c0_i32_0, %c0_i32_1 : i32, i32, i32
  }
  func.func @transform_3(%arg0: i32) -> (i32, i32) {
    %c0_i32 = arith.constant 0 : i32
    %c0_i32_0 = arith.constant 0 : i32
    return %c0_i32, %arg0 : i32, i32
  }
}

</mosaic_0001>

<llo_original>
// kernel: dense_block_pallas.1
$region0: #{dense_block_pallas.1}
  #allocation0 [shape = 'u32[]', space=smem, size = 0x4, offset = 0x4, fixed_abs, tag = 'smem constant byte address 0x4 - core index']
  #allocation1 [shape = 'u32[144,128]{1,0:T(1,128)}', space=vmem, size = 0x12000, scoped, tag = 'internal scratch']
  %s0 = inlined_call_operand.vmem [shape: f32[4,256], index: 0, kind: input, shape index: {}]
  %s1 = inlined_call_operand.vmem [shape: f32[3,12,12], index: 1, kind: input, shape index: {}]
  %s2 = inlined_call_operand.vmem [shape: f32[3,12,3], index: 2, kind: input, shape index: {}]
  %s3 = inlined_call_operand.vmem [shape: f32[16,256], index: 3, kind: output, shape index: {}]
  %s4 = sld [smem:[#allocation0]]
  $region22: #{dense_block_pallas.1} parent=0
    _
  %s6 = ssub.s32 1, %s4
  %s7 = scalar_select 0, %s6, %s4
  // Predicated region
  $region2: #{dense_block_pallas.1} parent=0 // pred_check
    _
  $region3: #{dense_block_pallas.1} parent=0 // pred_check_branch
    %9 = sbr.rel (0) target = $region5
  $region4: #{dense_block_pallas.1} parent=0 // pred_region
    _
  $region5: #{dense_block_pallas.1} parent=0 // pred_fallthru
    _
  // Predicated region
  $region6: #{dense_block_pallas.1} parent=0 // pred_check
    _
  $region7: #{dense_block_pallas.1} parent=0 // pred_check_branch
    %11 = sbr.rel (0) target = $region9
  $region8: #{dense_block_pallas.1} parent=0 // pred_region
    _
  $region9: #{dense_block_pallas.1} parent=0 // pred_fallthru
    _
  // Predicated region
  $region10: #{dense_block_pallas.1} parent=0 // pred_check
    _
  $region11: #{dense_block_pallas.1} parent=0 // pred_check_branch
    %13 = sbr.rel (0) target = $region13
  $region12: #{dense_block_pallas.1} parent=0 // pred_region
    _
  $region13: #{dense_block_pallas.1} parent=0 // pred_fallthru
    _
  %v14 = vld [vmem:[%s0] sm:$0xff]
  %v16 = vcombine.high %v14, %v14
  %18 = vst [vmem:[%s3] sm:$0xf] %v14
  %19 = vst [vmem:[%s3 + $0x8] sm:$0xf] %v16
  %v20 = vlaneseq
  %v21 = vand.u32 %v20, 127
  %v22 = vadd.s32 %v21, 128
  %vm23 = vcmp.lt.s32.totalorder %v21, 0
  %v24 = vsub.s32 0, %v21
  %v25 = vsel %vm23, %v24, %v21
  %v26 = vshrl.u32 %v25, 7
  %v27 = vand.u32 %v25, 127
  %v28 = vsub.s32 0, %v27
  %v29 = vsel %vm23, %v28, %v27
  %vm30 = vcmp.lt.s32.totalorder %v22, 0
  %v31 = vsub.s32 0, %v22
  %v32 = vsel %vm30, %v31, %v22
  %v33 = vshrl.u32 %v32, 7
  %v34 = vand.u32 %v32, 127
  %v35 = vsub.s32 0, %v34
  %v36 = vsel %vm30, %v35, %v34
  %vm37 = vcmp.ne.s32.totalorder %v29, 0
  %vm38 = vcmp.ne.s32.totalorder %v36, 0
  %vm39 = vcmp.lt.s32.totalorder %v29, 0
  %vm40 = vcmp.lt.s32.totalorder %v36, 0
  %vm41 = vmand %vm39, %vm37
  %vm42 = vmand %vm40, %vm38
  %v43 = vadd.s32 %v29, 128
  %v44 = vadd.s32 %v36, 128
  %v45 = vsel %vm41, %v43, %v29
  %v46 = vsel %vm42, %v44, %v36
  %vm47 = vcmp.eq.s32.totalorder %v45, 0
  %vm48 = vcmp.eq.s32.totalorder %v46, 0
  %vm49 = vcmp.eq.s32.totalorder %v45, 127
  %vm50 = vcmp.eq.s32.totalorder %v46, 127
  %v51 = vld [vmem:[%s1] sm:$0xff]
  %v52 = vld [vmem:[%s1 + $0x8] sm:$0xf]
  %v53 = vld [vmem:[%s2] sm:$0xff]
  %55 = vset.pattern.permute.xlu0 0
  %56 = vperm.xlu0 %55, %v53
  %v57 = vpop.permute.xlu0 %56
  %v59 = vunpack.c.l.s4 839922192
  %v60 = vunpack.c.0.s8 %v59
  %v61 = vlaneseq
  %v62 = vshrl.u32 %v61, 7
  %v63 = vsub.s32 %v60, %v62
  %v64 = vrot.slane %v57, %v63
  %v66 = vmul.f32 %v14, %v64
  %67 = vset.pattern.permute.xlu0 1
  %68 = vperm.xlu0 %67, %v53
  %v69 = vpop.permute.xlu0 %68
  %v71 = vunpack.c.l.s4 839922192
  %v72 = vunpack.c.0.s8 %v71
  %v73 = vlaneseq
  %v74 = vshrl.u32 %v73, 7
  %v75 = vsub.s32 %v72, %v74
  %v76 = vrot.slane %v69, %v75
  %v78 = vadd.f32 %v66, %v76
  %v79 = vmul.f32 %v78, 0.5
  %v80 = vmul.f32 %v78, 0.70710677
  %v81 = vand.u32 2147483647, %v80
  %v82 = vmul.f32 %v81, 0.3275911
  %v83 = vadd.f32 %v82, 1.0
  %v84 = vrcp.pop %v83
  %v85 = vmul.f32 %v83, %v84
  %v86 = vsub.f32 2.0, %v85
  %v87 = vmul.f32 %v84, %v86
  %v88 = vmul.f32 %v87, 1.0614054
  %v89 = vadd.f32 %v88, -1.4531521
  %v90 = vmul.f32 %v89, %v87
  %v91 = vadd.f32 %v90, 1.4214138
  %v92 = vmul.f32 %v91, %v87
  %v93 = vadd.f32 %v92, -0.28449672
  %v94 = vmul.f32 %v93, %v87
  %v95 = vadd.f32 %v94, 0.2548296
  %v96 = vmul.f32 %v95, %v87
  %v97 = vsub.f32 0.0, %v81
  %v98 = vmul.f32 %v97, %v81
  %v99 = vmul.f32 %v98, 1.442695
  %v100 = vpow.pop %v99
  %v101 = vmul.f32 %v96, %v100
  %v102 = vsub.f32 1.0, %v101
  %vm103 = vcmp.ge.f32.partialorder %v80, 0.0
  %v104 = vsub.f32 0.0, %v102
  %v105 = vsel %vm103, %v102, %v104
  %v106 = vadd.f32 %v105, 1.0
  %v107 = vmul.f32 %v79, %v106
  %v109 = vcombine.high %v107, %v107
  %vm110 = vcmask 31744
  %v112 = vsel %vm110, %v51, 0
  %v115 = vsel %vm110, %v52, 0
  %vm117 = vcmask 1043456
  %v118 = vsel %vm117, %v107, 0
  %v120 = vsel %vm117, %v109, 0
  %122 = vmatprep.subr.mxu0 0.0
  %123 = vmatpush1.msra.mxu0 0.0
  %124 = vmatprep.subr.mxu0 0.0
  %125 = vmatpush1.msra.mxu0 0.0
  %126 = vmatprep.subr.mxu0 0.0
  %127 = vmatpush1.msra.mxu0 0.0
  %128 = vmatprep.subr.mxu0 0.0
  %129 = vmatpush1.msra.mxu0 0.0
  %130 = vmatprep.subr.mxu0 0.0
  %131 = vmatpush1.msra.mxu0 0.0
  %132 = vmatprep.subr.mxu0 0.0
  %133 = vmatpush1.msra.mxu0 0.0
  %134 = vmatprep.subr.mxu0 0.0
  %135 = vmatpush1.msra.mxu0 0.0
  %136 = vmatprep.subr.mxu0 0.0
  %137 = vmatpush1.msra.mxu0 0.0
  %138 = vmatprep.subr.mxu0 0.0
  %139 = vmatpush1.msra.mxu0 0.0
  %140 = vmatprep.subr.mxu0 0.0
  %141 = vmatpush1.msra.mxu0 0.0
  %142 = vmatprep.subr.mxu0 0.0
  %143 = vmatpush1.msra.mxu0 0.0
  %144 = vmatprep.subr.mxu0 0.0
  %145 = vmatpush1.msra.mxu0 0.0
  %146 = vmatprep.subr.mxu0 0.0
  %147 = vmatpush1.msra.mxu0 0.0
  %148 = vmatprep.subr.mxu0 0.0
  %149 = vmatpush1.msra.mxu0 0.0
  %150 = vmatprep.subr.mxu0 0.0
  %151 = vmatpush1.msra.mxu0 0.0
  %152 = vmatprep.subr.mxu0 %v120
  %153 = vmatpush1.msra.mxu0 %v118
  %154 = vmatprep.subr.mxu0 0.0
  %155 = vmatpush2.msra.mxu0 0.0
  %156 = vmatprep.subr.mxu0 0.0
  %157 = vmatpush2.msra.mxu0 0.0
  %158 = vmatprep.subr.mxu0 0.0
  %159 = vmatpush2.msra.mxu0 0.0
  %160 = vmatprep.subr.mxu0 0.0
  %161 = vmatpush2.msra.mxu0 0.0
  %162 = vmatprep.subr.mxu0 0.0
  %163 = vmatpush2.msra.mxu0 0.0
  %164 = vmatprep.subr.mxu0 0.0
  %165 = vmatpush2.msra.mxu0 0.0
  %166 = vmatprep.subr.mxu0 0.0
  %167 = vmatpush2.msra.mxu0 0.0
  %168 = vmatprep.subr.mxu0 0.0
  %169 = vmatpush2.msra.mxu0 0.0
  %170 = vmatprep.subr.mxu0 0.0
  %171 = vmatpush2.msra.mxu0 0.0
  %172 = vmatprep.subr.mxu0 0.0
  %173 = vmatpush2.msra.mxu0 0.0
  %174 = vmatprep.subr.mxu0 0.0
  %175 = vmatpush2.msra.mxu0 0.0
  %176 = vmatprep.subr.mxu0 0.0
  %177 = vmatpush2.msra.mxu0 0.0
  %178 = vmatprep.subr.mxu0 0.0
  %179 = vmatpush2.msra.mxu0 0.0
  %180 = vmatprep.subr.mxu0 0.0
  %181 = vmatpush2.msra.mxu0 0.0
  %182 = vmatprep.subr.mxu0 0.0
  %183 = vmatpush2.msra.mxu0 0.0
  %184 = vmatprep.subr.mxu0 0.0
  %185 = vmatpush2.msra.mxu0 0.0
  %186 = vmatprep.mubr.f32.mxu0 0.0
  %187 = vmatmul.mubr.f32.gmra.mxu0 %v112
  %v188 = vpop.f32.mrf.mxu0
  %v189 = vadd.f32 0.0, %v188
  %v190 = vpop.f32.mrf.mxu0
  %v191 = vadd.f32 0.0, %v190
  %192 = vmatprep.mubr.f32.mxu0 0.0
  %193 = vmatmul.mubr.f32.gmra.mxu0 %v115
  %v194 = vpop.f32.mrf.mxu0
  %v195 = vadd.f32 0.0, %v194
  %v196 = vpop.f32.mrf.mxu0
  %v197 = vadd.f32 0.0, %v196
  %198 = vdwg.mxu0
  %199 = vrot.lane.b32.xlu0 %v189, 1
  %v200 = vpop.permute.xlu0 %199
  %201 = vrot.lane.b32.xlu0 %v191, 1
  %v202 = vpop.permute.xlu0 %201
  %vm203 = vcmp.lt.s32.totalorder %v21, 1
  %v204 = vsel %vm203, %v200, %v202
  %v205 = vsel %vm203, %v202, %v200
  %v206 = vsel %vm47, 1, 0
  %v207 = vsel %vm48, 1, 0
  %vm208 = vcmp.eq.s32.totalorder %v206, 1
  %vm209 = vcmp.eq.s32.totalorder %v207, 1
  %v210 = vsel %vm208, 0.0, %v205
  %v211 = vsel %vm209, 0.0, %v204
  %v214 = vrot.slane %v189, 4
  %v215 = vrot.slane %v191, 4
  %v218 = vadd.f32 %v210, %v214
  %v219 = vadd.f32 %v211, %v215
  %220 = vrot.lane.b32.xlu0 %v195, 127
  %v221 = vpop.permute.xlu0 %220
  %222 = vrot.lane.b32.xlu0 %v197, 127
  %v223 = vpop.permute.xlu0 %222
  %vm224 = vcmp.lt.s32.totalorder %v21, 127
  %v225 = vsel %vm224, %v221, %v223
  %v226 = vsel %vm224, %v223, %v221
  %v227 = vsel %vm49, 1, 0
  %v228 = vsel %vm50, 1, 0
  %vm229 = vcmp.eq.s32.totalorder %v227, 1
  %vm230 = vcmp.eq.s32.totalorder %v228, 1
  %v231 = vsel %vm229, 0.0, %v225
  %v232 = vsel %vm230, 0.0, %v226
  %v233 = vadd.f32 %v218, %v231
  %v234 = vadd.f32 %v219, %v232
  %235 = vset.pattern.permute.xlu0 2
  %236 = vperm.xlu0 %235, %v53
  %v237 = vpop.permute.xlu0 %236
  %v239 = vadd.f32 %v233, %v237
  %v240 = vadd.f32 %v234, %v237
  %v243 = vrot.slane %v239, 4
  %v244 = vrot.slane %v240, 4
  %247 = vst [vmem:[%s3] sm:$0xf0] %v243
  %248 = vst [vmem:[%s3 + $0x8] sm:$0xf0] %v244
  %s249 = scalar_lea.vmem %s1, 16
  %v250 = vld [vmem:[%s249] sm:$0xff]
  %v251 = vld [vmem:[%s249 + $0x8] sm:$0xf]
  %s252 = scalar_lea.vmem %s2, 16
  %v253 = vld [vmem:[%s252] sm:$0xff]
  %255 = vset.pattern.permute.xlu0 0
  %256 = vperm.xlu0 %255, %v253
  %v257 = vpop.permute.xlu0 %256
  %v259 = vunpack.c.l.s4 839922192
  %v260 = vunpack.c.0.s8 %v259
  %v261 = vlaneseq
  %v262 = vshrl.u32 %v261, 7
  %v263 = vsub.s32 %v260, %v262
  %v264 = vrot.slane %v257, %v263
  %v266 = vmul.f32 %v14, %v264
  %267 = vset.pattern.permute.xlu0 1
  %268 = vperm.xlu0 %267, %v253
  %v269 = vpop.permute.xlu0 %268
  %v271 = vunpack.c.l.s4 839922192
  %v272 = vunpack.c.0.s8 %v271
  %v273 = vlaneseq
  %v274 = vshrl.u32 %v273, 7
  %v275 = vsub.s32 %v272, %v274
  %v276 = vrot.slane %v269, %v275
  %v278 = vadd.f32 %v266, %v276
  %v279 = vmul.f32 %v278, 0.5
  %v280 = vmul.f32 %v278, 0.70710677
  %v281 = vand.u32 2147483647, %v280
  %v282 = vmul.f32 %v281, 0.3275911
  %v283 = vadd.f32 %v282, 1.0
  %v284 = vrcp.pop %v283
  %v285 = vmul.f32 %v283, %v284
  %v286 = vsub.f32 2.0, %v285
  %v287 = vmul.f32 %v284, %v286
  %v288 = vmul.f32 %v287, 1.0614054
  %v289 = vadd.f32 %v288, -1.4531521
  %v290 = vmul.f32 %v289, %v287
  %v291 = vadd.f32 %v290, 1.4214138
  %v292 = vmul.f32 %v291, %v287
  %v293 = vadd.f32 %v292, -0.28449672
  %v294 = vmul.f32 %v293, %v287
  %v295 = vadd.f32 %v294, 0.2548296
  %v296 = vmul.f32 %v295, %v287
  %v297 = vsub.f32 0.0, %v281
  %v298 = vmul.f32 %v297, %v281
  %v299 = vmul.f32 %v298, 1.442695
  %v300 = vpow.pop %v299
  %v301 = vmul.f32 %v296, %v300
  %v302 = vsub.f32 1.0, %v301
  %vm303 = vcmp.ge.f32.partialorder %v280, 0.0
  %v304 = vsub.f32 0.0, %v302
  %v305 = vsel %vm303, %v302, %v304
  %v306 = vadd.f32 %v305, 1.0
  %v307 = vmul.f32 %v279, %v306
  %v308 = vrot.slane %v257, 4
  %v310 = vmul.f32 %v239, %v308
  %v311 = vmul.f32 %v240, %v308
  %v312 = vrot.slane %v269, 4
  %v314 = vadd.f32 %v310, %v312
  %v315 = vadd.f32 %v311, %v312
  %v316 = vmul.f32 %v314, 0.5
  %v317 = vmul.f32 %v315, 0.5
  %v318 = vmul.f32 %v314, 0.70710677
  %v319 = vmul.f32 %v315, 0.70710677
  %v320 = vand.u32 2147483647, %v318
  %v321 = vand.u32 2147483647, %v319
  %v322 = vmul.f32 %v320, 0.3275911
  %v323 = vmul.f32 %v321, 0.3275911
  %v324 = vadd.f32 %v322, 1.0
  %v325 = vadd.f32 %v323, 1.0
  %v326 = vrcp.pop %v324
  %v327 = vrcp.pop %v325
  %v328 = vmul.f32 %v324, %v326
  %v329 = vmul.f32 %v325, %v327
  %v330 = vsub.f32 2.0, %v328
  %v331 = vsub.f32 2.0, %v329
  %v332 = vmul.f32 %v326, %v330
  %v333 = vmul.f32 %v327, %v331
  %v334 = vmul.f32 %v332, 1.0614054
  %v335 = vmul.f32 %v333, 1.0614054
  %v336 = vadd.f32 %v334, -1.4531521
  %v337 = vadd.f32 %v335, -1.4531521
  %v338 = vmul.f32 %v336, %v332
  %v339 = vmul.f32 %v337, %v333
  %v340 = vadd.f32 %v338, 1.4214138
  %v341 = vadd.f32 %v339, 1.4214138
  %v342 = vmul.f32 %v340, %v332
  %v343 = vmul.f32 %v341, %v333
  %v344 = vadd.f32 %v342, -0.28449672
  %v345 = vadd.f32 %v343, -0.28449672
  %v346 = vmul.f32 %v344, %v332
  %v347 = vmul.f32 %v345, %v333
  %v348 = vadd.f32 %v346, 0.2548296
  %v349 = vadd.f32 %v347, 0.2548296
  %v350 = vmul.f32 %v348, %v332
  %v351 = vmul.f32 %v349, %v333
  %v352 = vsub.f32 0.0, %v320
  %v353 = vsub.f32 0.0, %v321
  %v354 = vmul.f32 %v352, %v320
  %v355 = vmul.f32 %v353, %v321
  %v356 = vmul.f32 %v354, 1.442695
  %v357 = vpow.pop %v356
  %v358 = vmul.f32 %v355, 1.442695
  %v359 = vpow.pop %v358
  %v360 = vmul.f32 %v350, %v357
  %v361 = vmul.f32 %v351, %v359
  %v362 = vsub.f32 1.0, %v360
  %v363 = vsub.f32 1.0, %v361
  %vm364 = vcmp.ge.f32.partialorder %v318, 0.0
  %vm365 = vcmp.ge.f32.partialorder %v319, 0.0
  %v366 = vsub.f32 0.0, %v362
  %v367 = vsub.f32 0.0, %v363
  %v368 = vsel %vm364, %v362, %v366
  %v369 = vsel %vm365, %v363, %v367
  %v370 = vadd.f32 %v368, 1.0
  %v371 = vadd.f32 %v369, 1.0
  %v372 = vmul.f32 %v316, %v370
  %v373 = vmul.f32 %v317, %v371
  %376 = vrot.lane.b32.xlu0 %v250, 124
  %v377 = vpop.permute.xlu0 %376
  %378 = vrot.lane.b32.xlu0 %v251, 124
  %v379 = vpop.permute.xlu0 %378
  %v380 = vsel %vm110, %v377, 0
  %v382 = vsel %vm110, %v379, 0
  %v385 = vsel %vm117, %v372, 0
  %v388 = vsel %vm117, %v373, 0
  %390 = vmatprep.subr.mxu0 0.0
  %391 = vmatpush1.msra.mxu0 0.0
  %392 = vmatprep.subr.mxu0 0.0
  %393 = vmatpush1.msra.mxu0 0.0
  %394 = vmatprep.subr.mxu0 0.0
  %395 = vmatpush1.msra.mxu0 0.0
  %396 = vmatprep.subr.mxu0 0.0
  %397 = vmatpush1.msra.mxu0 0.0
  %398 = vmatprep.subr.mxu0 0.0
  %399 = vmatpush1.msra.mxu0 0.0
  %400 = vmatprep.subr.mxu0 0.0
  %401 = vmatpush1.msra.mxu0 0.0
  %402 = vmatprep.subr.mxu0 0.0
  %403 = vmatpush1.msra.mxu0 0.0
  %404 = vmatprep.subr.mxu0 0.0
  %405 = vmatpush1.msra.mxu0 0.0
  %406 = vmatprep.subr.mxu0 0.0
  %407 = vmatpush1.msra.mxu0 0.0
  %408 = vmatprep.subr.mxu0 0.0
  %409 = vmatpush1.msra.mxu0 0.0
  %410 = vmatprep.subr.mxu0 0.0
  %411 = vmatpush1.msra.mxu0 0.0
  %412 = vmatprep.subr.mxu0 0.0
  %413 = vmatpush1.msra.mxu0 0.0
  %414 = vmatprep.subr.mxu0 0.0
  %415 = vmatpush1.msra.mxu0 0.0
  %416 = vmatprep.subr.mxu0 0.0
  %417 = vmatpush1.msra.mxu0 0.0
  %418 = vmatprep.subr.mxu0 0.0
  %419 = vmatpush1.msra.mxu0 0.0
  %420 = vmatprep.subr.mxu0 %v388
  %421 = vmatpush1.msra.mxu0 %v385
  %422 = vmatprep.subr.mxu0 0.0
  %423 = vmatpush2.msra.mxu0 0.0
  %424 = vmatprep.subr.mxu0 0.0
  %425 = vmatpush2.msra.mxu0 0.0
  %426 = vmatprep.subr.mxu0 0.0
  %427 = vmatpush2.msra.mxu0 0.0
  %428 = vmatprep.subr.mxu0 0.0
  %429 = vmatpush2.msra.mxu0 0.0
  %430 = vmatprep.subr.mxu0 0.0
  %431 = vmatpush2.msra.mxu0 0.0
  %432 = vmatprep.subr.mxu0 0.0
  %433 = vmatpush2.msra.mxu0 0.0
  %434 = vmatprep.subr.mxu0 0.0
  %435 = vmatpush2.msra.mxu0 0.0
  %436 = vmatprep.subr.mxu0 0.0
  %437 = vmatpush2.msra.mxu0 0.0
  %438 = vmatprep.subr.mxu0 0.0
  %439 = vmatpush2.msra.mxu0 0.0
  %440 = vmatprep.subr.mxu0 0.0
  %441 = vmatpush2.msra.mxu0 0.0
  %442 = vmatprep.subr.mxu0 0.0
  %443 = vmatpush2.msra.mxu0 0.0
  %444 = vmatprep.subr.mxu0 0.0
  %445 = vmatpush2.msra.mxu0 0.0
  %446 = vmatprep.subr.mxu0 0.0
  %447 = vmatpush2.msra.mxu0 0.0
  %448 = vmatprep.subr.mxu0 0.0
  %449 = vmatpush2.msra.mxu0 0.0
  %450 = vmatprep.subr.mxu0 0.0
  %451 = vmatpush2.msra.mxu0 0.0
  %452 = vmatprep.subr.mxu0 0.0
  %453 = vmatpush2.msra.mxu0 0.0
  %454 = vmatprep.mubr.f32.mxu0 0.0
  %455 = vmatmul.mubr.f32.gmra.mxu0 %v380
  %v456 = vpop.f32.mrf.mxu0
  %v457 = vadd.f32 0.0, %v456
  %v458 = vpop.f32.mrf.mxu0
  %v459 = vadd.f32 0.0, %v458
  %460 = vmatprep.mubr.f32.mxu0 0.0
  %461 = vmatmul.mubr.f32.gmra.mxu0 %v382
  %v462 = vpop.f32.mrf.mxu0
  %v463 = vadd.f32 0.0, %v462
  %v464 = vpop.f32.mrf.mxu0
  %v465 = vadd.f32 0.0, %v464
  %466 = vdwg.mxu0
  %v468 = vcombine.high %v307, %v307
  %v469 = vsel %vm110, %v250, 0
  %v471 = vsel %vm110, %v251, 0
  %v473 = vsel %vm117, %v307, 0
  %v475 = vsel %vm117, %v468, 0
  %477 = vmatprep.subr.mxu0 0.0
  %478 = vmatpush1.msra.mxu0 0.0
  %479 = vmatprep.subr.mxu0 0.0
  %480 = vmatpush1.msra.mxu0 0.0
  %481 = vmatprep.subr.mxu0 0.0
  %482 = vmatpush1.msra.mxu0 0.0
  %483 = vmatprep.subr.mxu0 0.0
  %484 = vmatpush1.msra.mxu0 0.0
  %485 = vmatprep.subr.mxu0 0.0
  %486 = vmatpush1.msra.mxu0 0.0
  %487 = vmatprep.subr.mxu0 0.0
  %488 = vmatpush1.msra.mxu0 0.0
  %489 = vmatprep.subr.mxu0 0.0
  %490 = vmatpush1.msra.mxu0 0.0
  %491 = vmatprep.subr.mxu0 0.0
  %492 = vmatpush1.msra.mxu0 0.0
  %493 = vmatprep.subr.mxu0 0.0
  %494 = vmatpush1.msra.mxu0 0.0
  %495 = vmatprep.subr.mxu0 0.0
  %496 = vmatpush1.msra.mxu0 0.0
  %497 = vmatprep.subr.mxu0 0.0
  %498 = vmatpush1.msra.mxu0 0.0
  %499 = vmatprep.subr.mxu0 0.0
  %500 = vmatpush1.msra.mxu0 0.0
  %501 = vmatprep.subr.mxu0 0.0
  %502 = vmatpush1.msra.mxu0 0.0
  %503 = vmatprep.subr.mxu0 0.0
  %504 = vmatpush1.msra.mxu0 0.0
  %505 = vmatprep.subr.mxu0 0.0
  %506 = vmatpush1.msra.mxu0 0.0
  %507 = vmatprep.subr.mxu0 %v475
  %508 = vmatpush1.msra.mxu0 %v473
  %509 = vmatprep.subr.mxu0 0.0
  %510 = vmatpush2.msra.mxu0 0.0
  %511 = vmatprep.subr.mxu0 0.0
  %512 = vmatpush2.msra.mxu0 0.0
  %513 = vmatprep.subr.mxu0 0.0
  %514 = vmatpush2.msra.mxu0 0.0
  %515 = vmatprep.subr.mxu0 0.0
  %516 = vmatpush2.msra.mxu0 0.0
  %517 = vmatprep.subr.mxu0 0.0
  %518 = vmatpush2.msra.mxu0 0.0
  %519 = vmatprep.subr.mxu0 0.0
  %520 = vmatpush2.msra.mxu0 0.0
  %521 = vmatprep.subr.mxu0 0.0
  %522 = vmatpush2.msra.mxu0 0.0
  %523 = vmatprep.subr.mxu0 0.0
  %524 = vmatpush2.msra.mxu0 0.0
  %525 = vmatprep.subr.mxu0 0.0
  %526 = vmatpush2.msra.mxu0 0.0
  %527 = vmatprep.subr.mxu0 0.0
  %528 = vmatpush2.msra.mxu0 0.0
  %529 = vmatprep.subr.mxu0 0.0
  %530 = vmatpush2.msra.mxu0 0.0
  %531 = vmatprep.subr.mxu0 0.0
  %532 = vmatpush2.msra.mxu0 0.0
  %533 = vmatprep.subr.mxu0 0.0
  %534 = vmatpush2.msra.mxu0 0.0
  %535 = vmatprep.subr.mxu0 0.0
  %536 = vmatpush2.msra.mxu0 0.0
  %537 = vmatprep.subr.mxu0 0.0
  %538 = vmatpush2.msra.mxu0 0.0
  %539 = vmatprep.subr.mxu0 0.0
  %540 = vmatpush2.msra.mxu0 0.0
  %541 = vmatprep.mubr.f32.mxu0 0.0
  %542 = vmatmul.mubr.f32.gmra.mxu0 %v469
  %v543 = vpop.f32.mrf.mxu0
  %v544 = vadd.f32 %v457, %v543
  %v545 = vpop.f32.mrf.mxu0
  %v546 = vadd.f32 %v459, %v545
  %547 = vmatprep.mubr.f32.mxu0 0.0
  %548 = vmatmul.mubr.f32.gmra.mxu0 %v471
  %v549 = vpop.f32.mrf.mxu0
  %v550 = vadd.f32 %v463, %v549
  %v551 = vpop.f32.mrf.mxu0
  %v552 = vadd.f32 %v465, %v551
  %553 = vdwg.mxu0
  %554 = vrot.lane.b32.xlu0 %v544, 1
  %v555 = vpop.permute.xlu0 %554
  %556 = vrot.lane.b32.xlu0 %v546, 1
  %v557 = vpop.permute.xlu0 %556
  %v558 = vsel %vm203, %v555, %v557
  %v559 = vsel %vm203, %v557, %v555
  %v560 = vsel %vm208, 0.0, %v559
  %v561 = vsel %vm209, 0.0, %v558
  %v564 = vrot.slane %v544, 4
  %v565 = vrot.slane %v546, 4
  %v568 = vadd.f32 %v560, %v564
  %v569 = vadd.f32 %v561, %v565
  %570 = vrot.lane.b32.xlu0 %v550, 127
  %v571 = vpop.permute.xlu0 %570
  %572 = vrot.lane.b32.xlu0 %v552, 127
  %v573 = vpop.permute.xlu0 %572
  %v574 = vsel %vm224, %v571, %v573
  %v575 = vsel %vm224, %v573, %v571
  %v576 = vsel %vm229, 0.0, %v574
  %v577 = vsel %vm230, 0.0, %v575
  %v578 = vadd.f32 %v568, %v576
  %v579 = vadd.f32 %v569, %v577
  %580 = vset.pattern.permute.xlu0 2
  %581 = vperm.xlu0 %580, %v253
  %v582 = vpop.permute.xlu0 %581
  %v584 = vadd.f32 %v578, %v582
  %v585 = vadd.f32 %v579, %v582
  %586 = vst [vmem:[%s3 + $0x10] sm:$0xf] %v584
  %587 = vst [vmem:[%s3 + $0x18] sm:$0xf] %v585
  %s588 = scalar_lea.vmem %s1, 32
  %v589 = vld [vmem:[%s588] sm:$0xff]
  %v590 = vld [vmem:[%s588 + $0x8] sm:$0xf]
  %s591 = scalar_lea.vmem %s2, 32
  %v592 = vld [vmem:[%s591] sm:$0xff]
  %v593 = vld [vmem:[%s591 + $0x8] sm:$0xf]
  %595 = vset.pattern.permute.xlu0 0
  %596 = vperm.xlu0 %595, %v592
  %v597 = vpop.permute.xlu0 %596
  %v599 = vunpack.c.l.s4 839922192
  %v600 = vunpack.c.0.s8 %v599
  %v601 = vlaneseq
  %v602 = vshrl.u32 %v601, 7
  %v603 = vsub.s32 %v600, %v602
  %v604 = vrot.slane %v597, %v603
  %v606 = vmul.f32 %v14, %v604
  %607 = vset.pattern.permute.xlu0 1
  %608 = vperm.xlu0 %607, %v592
  %v609 = vpop.permute.xlu0 %608
  %v611 = vunpack.c.l.s4 839922192
  %v612 = vunpack.c.0.s8 %v611
  %v613 = vlaneseq
  %v614 = vshrl.u32 %v613, 7
  %v615 = vsub.s32 %v612, %v614
  %v616 = vrot.slane %v609, %v615
  %v618 = vadd.f32 %v606, %v616
  %v619 = vmul.f32 %v618, 0.5
  %v620 = vmul.f32 %v618, 0.70710677
  %v621 = vand.u32 2147483647, %v620
  %v622 = vmul.f32 %v621, 0.3275911
  %v623 = vadd.f32 %v622, 1.0
  %v624 = vrcp.pop %v623
  %v625 = vmul.f32 %v623, %v624
  %v626 = vsub.f32 2.0, %v625
  %v627 = vmul.f32 %v624, %v626
  %v628 = vmul.f32 %v627, 1.0614054
  %v629 = vadd.f32 %v628, -1.4531521
  %v630 = vmul.f32 %v629, %v627
  %v631 = vadd.f32 %v630, 1.4214138
  %v632 = vmul.f32 %v631, %v627
  %v633 = vadd.f32 %v632, -0.28449672
  %v634 = vmul.f32 %v633, %v627
  %v635 = vadd.f32 %v634, 0.2548296
  %v636 = vmul.f32 %v635, %v627
  %v637 = vsub.f32 0.0, %v621
  %v638 = vmul.f32 %v637, %v621
  %v639 = vmul.f32 %v638, 1.442695
  %v640 = vpow.pop %v639
  %v641 = vmul.f32 %v636, %v640
  %v642 = vsub.f32 1.0, %v641
  %vm643 = vcmp.ge.f32.partialorder %v620, 0.0
  %v644 = vsub.f32 0.0, %v642
  %v645 = vsel %vm643, %v642, %v644
  %v646 = vadd.f32 %v645, 1.0
  %v647 = vmul.f32 %v619, %v646
  %v648 = vrot.slane %v597, 4
  %v650 = vmul.f32 %v239, %v648
  %v651 = vmul.f32 %v240, %v648
  %v652 = vrot.slane %v609, 4
  %v654 = vadd.f32 %v650, %v652
  %v655 = vadd.f32 %v651, %v652
  %v656 = vmul.f32 %v654, 0.5
  %v657 = vmul.f32 %v655, 0.5
  %v658 = vmul.f32 %v654, 0.70710677
  %v659 = vmul.f32 %v655, 0.70710677
  %v660 = vand.u32 2147483647, %v658
  %v661 = vand.u32 2147483647, %v659
  %v662 = vmul.f32 %v660, 0.3275911
  %v663 = vmul.f32 %v661, 0.3275911
  %v664 = vadd.f32 %v662, 1.0
  %v665 = vadd.f32 %v663, 1.0
  %v666 = vrcp.pop %v664
  %v667 = vrcp.pop %v665
  %v668 = vmul.f32 %v664, %v666
  %v669 = vmul.f32 %v665, %v667
  %v670 = vsub.f32 2.0, %v668
  %v671 = vsub.f32 2.0, %v669
  %v672 = vmul.f32 %v666, %v670
  %v673 = vmul.f32 %v667, %v671
  %v674 = vmul.f32 %v672, 1.0614054
  %v675 = vmul.f32 %v673, 1.0614054
  %v676 = vadd.f32 %v674, -1.4531521
  %v677 = vadd.f32 %v675, -1.4531521
  %v678 = vmul.f32 %v676, %v672
  %v679 = vmul.f32 %v677, %v673
  %v680 = vadd.f32 %v678, 1.4214138
  %v681 = vadd.f32 %v679, 1.4214138
  %v682 = vmul.f32 %v680, %v672
  %v683 = vmul.f32 %v681, %v673
  %v684 = vadd.f32 %v682, -0.28449672
  %v685 = vadd.f32 %v683, -0.28449672
  %v686 = vmul.f32 %v684, %v672
  %v687 = vmul.f32 %v685, %v673
  %v688 = vadd.f32 %v686, 0.2548296
  %v689 = vadd.f32 %v687, 0.2548296
  %v690 = vmul.f32 %v688, %v672
  %v691 = vmul.f32 %v689, %v673
  %v692 = vsub.f32 0.0, %v660
  %v693 = vsub.f32 0.0, %v661
  %v694 = vmul.f32 %v692, %v660
  %v695 = vmul.f32 %v693, %v661
  %v696 = vmul.f32 %v694, 1.442695
  %v697 = vpow.pop %v696
  %v698 = vmul.f32 %v695, 1.442695
  %v699 = vpow.pop %v698
  %v700 = vmul.f32 %v690, %v697
  %v701 = vmul.f32 %v691, %v699
  %v702 = vsub.f32 1.0, %v700
  %v703 = vsub.f32 1.0, %v701
  %vm704 = vcmp.ge.f32.partialorder %v658, 0.0
  %vm705 = vcmp.ge.f32.partialorder %v659, 0.0
  %v706 = vsub.f32 0.0, %v702
  %v707 = vsub.f32 0.0, %v703
  %v708 = vsel %vm704, %v702, %v706
  %v709 = vsel %vm705, %v703, %v707
  %v710 = vadd.f32 %v708, 1.0
  %v711 = vadd.f32 %v709, 1.0
  %v712 = vmul.f32 %v656, %v710
  %v713 = vmul.f32 %v657, %v711
  %716 = vrot.lane.b32.xlu0 %v589, 124
  %v717 = vpop.permute.xlu0 %716
  %718 = vrot.lane.b32.xlu0 %v590, 124
  %v719 = vpop.permute.xlu0 %718
  %v720 = vsel %vm110, %v717, 0
  %v722 = vsel %vm110, %v719, 0
  %v725 = vsel %vm117, %v712, 0
  %v728 = vsel %vm117, %v713, 0
  %730 = vmatprep.subr.mxu0 0.0
  %731 = vmatpush1.msra.mxu0 0.0
  %732 = vmatprep.subr.mxu0 0.0
  %733 = vmatpush1.msra.mxu0 0.0
  %734 = vmatprep.subr.mxu0 0.0
  %735 = vmatpush1.msra.mxu0 0.0
  %736 = vmatprep.subr.mxu0 0.0
  %737 = vmatpush1.msra.mxu0 0.0
  %738 = vmatprep.subr.mxu0 0.0
  %739 = vmatpush1.msra.mxu0 0.0
  %740 = vmatprep.subr.mxu0 0.0
  %741 = vmatpush1.msra.mxu0 0.0
  %742 = vmatprep.subr.mxu0 0.0
  %743 = vmatpush1.msra.mxu0 0.0
  %744 = vmatprep.subr.mxu0 0.0
  %745 = vmatpush1.msra.mxu0 0.0
  %746 = vmatprep.subr.mxu0 0.0
  %747 = vmatpush1.msra.mxu0 0.0
  %748 = vmatprep.subr.mxu0 0.0
  %749 = vmatpush1.msra.mxu0 0.0
  %750 = vmatprep.subr.mxu0 0.0
  %751 = vmatpush1.msra.mxu0 0.0
  %752 = vmatprep.subr.mxu0 0.0
  %753 = vmatpush1.msra.mxu0 0.0
  %754 = vmatprep.subr.mxu0 0.0
  %755 = vmatpush1.msra.mxu0 0.0
  %756 = vmatprep.subr.mxu0 0.0
  %757 = vmatpush1.msra.mxu0 0.0
  %758 = vmatprep.subr.mxu0 0.0
  %759 = vmatpush1.msra.mxu0 0.0
  %760 = vmatprep.subr.mxu0 %v728
  %761 = vmatpush1.msra.mxu0 %v725
  %762 = vmatprep.subr.mxu0 0.0
  %763 = vmatpush2.msra.mxu0 0.0
  %764 = vmatprep.subr.mxu0 0.0
  %765 = vmatpush2.msra.mxu0 0.0
  %766 = vmatprep.subr.mxu0 0.0
  %767 = vmatpush2.msra.mxu0 0.0
  %768 = vmatprep.subr.mxu0 0.0
  %769 = vmatpush2.msra.mxu0 0.0
  %770 = vmatprep.subr.mxu0 0.0
  %771 = vmatpush2.msra.mxu0 0.0
  %772 = vmatprep.subr.mxu0 0.0
  %773 = vmatpush2.msra.mxu0 0.0
  %774 = vmatprep.subr.mxu0 0.0
  %775 = vmatpush2.msra.mxu0 0.0
  %776 = vmatprep.subr.mxu0 0.0
  %777 = vmatpush2.msra.mxu0 0.0
  %778 = vmatprep.subr.mxu0 0.0
  %779 = vmatpush2.msra.mxu0 0.0
  %780 = vmatprep.subr.mxu0 0.0
  %781 = vmatpush2.msra.mxu0 0.0
  %782 = vmatprep.subr.mxu0 0.0
  %783 = vmatpush2.msra.mxu0 0.0
  %784 = vmatprep.subr.mxu0 0.0
  %785 = vmatpush2.msra.mxu0 0.0
  %786 = vmatprep.subr.mxu0 0.0
  %787 = vmatpush2.msra.mxu0 0.0
  %788 = vmatprep.subr.mxu0 0.0
  %789 = vmatpush2.msra.mxu0 0.0
  %790 = vmatprep.subr.mxu0 0.0
  %791 = vmatpush2.msra.mxu0 0.0
  %792 = vmatprep.subr.mxu0 0.0
  %793 = vmatpush2.msra.mxu0 0.0
  %794 = vmatprep.mubr.f32.mxu0 0.0
  %795 = vmatmul.mubr.f32.gmra.mxu0 %v720
  %v796 = vpop.f32.mrf.mxu0
  %v797 = vadd.f32 0.0, %v796
  %v798 = vpop.f32.mrf.mxu0
  %v799 = vadd.f32 0.0, %v798
  %800 = vmatprep.mubr.f32.mxu0 0.0
  %801 = vmatmul.mubr.f32.gmra.mxu0 %v722
  %v802 = vpop.f32.mrf.mxu0
  %v803 = vadd.f32 0.0, %v802
  %v804 = vpop.f32.mrf.mxu0
  %v805 = vadd.f32 0.0, %v804
  %806 = vdwg.mxu0
  %v808 = vcombine.high %v647, %v647
  %v809 = vsel %vm110, %v589, 0
  %v811 = vsel %vm110, %v590, 0
  %v813 = vsel %vm117, %v647, 0
  %v815 = vsel %vm117, %v808, 0
  %817 = vmatprep.subr.mxu0 0.0
  %818 = vmatpush1.msra.mxu0 0.0
  %819 = vmatprep.subr.mxu0 0.0
  %820 = vmatpush1.msra.mxu0 0.0
  %821 = vmatprep.subr.mxu0 0.0
  %822 = vmatpush1.msra.mxu0 0.0
  %823 = vmatprep.subr.mxu0 0.0
  %824 = vmatpush1.msra.mxu0 0.0
  %825 = vmatprep.subr.mxu0 0.0
  %826 = vmatpush1.msra.mxu0 0.0
  %827 = vmatprep.subr.mxu0 0.0
  %828 = vmatpush1.msra.mxu0 0.0
  %829 = vmatprep.subr.mxu0 0.0
  %830 = vmatpush1.msra.mxu0 0.0
  %831 = vmatprep.subr.mxu0 0.0
  %832 = vmatpush1.msra.mxu0 0.0
  %833 = vmatprep.subr.mxu0 0.0
  %834 = vmatpush1.msra.mxu0 0.0
  %835 = vmatprep.subr.mxu0 0.0
  %836 = vmatpush1.msra.mxu0 0.0
  %837 = vmatprep.subr.mxu0 0.0
  %838 = vmatpush1.msra.mxu0 0.0
  %839 = vmatprep.subr.mxu0 0.0
  %840 = vmatpush1.msra.mxu0 0.0
  %841 = vmatprep.subr.mxu0 0.0
  %842 = vmatpush1.msra.mxu0 0.0
  %843 = vmatprep.subr.mxu0 0.0
  %844 = vmatpush1.msra.mxu0 0.0
  %845 = vmatprep.subr.mxu0 0.0
  %846 = vmatpush1.msra.mxu0 0.0
  %847 = vmatprep.subr.mxu0 %v815
  %848 = vmatpush1.msra.mxu0 %v813
  %849 = vmatprep.subr.mxu0 0.0
  %850 = vmatpush2.msra.mxu0 0.0
  %851 = vmatprep.subr.mxu0 0.0
  %852 = vmatpush2.msra.mxu0 0.0
  %853 = vmatprep.subr.mxu0 0.0
  %854 = vmatpush2.msra.mxu0 0.0
  %855 = vmatprep.subr.mxu0 0.0
  %856 = vmatpush2.msra.mxu0 0.0
  %857 = vmatprep.subr.mxu0 0.0
  %858 = vmatpush2.msra.mxu0 0.0
  %859 = vmatprep.subr.mxu0 0.0
  %860 = vmatpush2.msra.mxu0 0.0
  %861 = vmatprep.subr.mxu0 0.0
  %862 = vmatpush2.msra.mxu0 0.0
  %863 = vmatprep.subr.mxu0 0.0
  %864 = vmatpush2.msra.mxu0 0.0
  %865 = vmatprep.subr.mxu0 0.0
  %866 = vmatpush2.msra.mxu0 0.0
  %867 = vmatprep.subr.mxu0 0.0
  %868 = vmatpush2.msra.mxu0 0.0
  %869 = vmatprep.subr.mxu0 0.0
  %870 = vmatpush2.msra.mxu0 0.0
  %871 = vmatprep.subr.mxu0 0.0
  %872 = vmatpush2.msra.mxu0 0.0
  %873 = vmatprep.subr.mxu0 0.0
  %874 = vmatpush2.msra.mxu0 0.0
  %875 = vmatprep.subr.mxu0 0.0
  %876 = vmatpush2.msra.mxu0 0.0
  %877 = vmatprep.subr.mxu0 0.0
  %878 = vmatpush2.msra.mxu0 0.0
  %879 = vmatprep.subr.mxu0 0.0
  %880 = vmatpush2.msra.mxu0 0.0
  %881 = vmatprep.mubr.f32.mxu0 0.0
  %882 = vmatmul.mubr.f32.gmra.mxu0 %v809
  %v883 = vpop.f32.mrf.mxu0
  %v884 = vadd.f32 %v797, %v883
  %v885 = vpop.f32.mrf.mxu0
  %v886 = vadd.f32 %v799, %v885
  %887 = vmatprep.mubr.f32.mxu0 0.0
  %888 = vmatmul.mubr.f32.gmra.mxu0 %v811
  %v889 = vpop.f32.mrf.mxu0
  %v890 = vadd.f32 %v803, %v889
  %v891 = vpop.f32.mrf.mxu0
  %v892 = vadd.f32 %v805, %v891
  %893 = vdwg.mxu0
  %895 = vset.pattern.permute.xlu0 0
  %896 = vperm.xlu0 %895, %v593
  %v897 = vpop.permute.xlu0 %896
  %v899 = vmul.f32 %v584, %v897
  %v900 = vmul.f32 %v585, %v897
  %901 = vset.pattern.permute.xlu0 1
  %902 = vperm.xlu0 %901, %v593
  %v903 = vpop.permute.xlu0 %902
  %v905 = vadd.f32 %v899, %v903
  %v906 = vadd.f32 %v900, %v903
  %v907 = vmul.f32 %v905, 0.5
  %v908 = vmul.f32 %v906, 0.5
  %v909 = vmul.f32 %v905, 0.70710677
  %v910 = vmul.f32 %v906, 0.70710677
  %v911 = vand.u32 2147483647, %v909
  %v912 = vand.u32 2147483647, %v910
  %v913 = vmul.f32 %v911, 0.3275911
  %v914 = vmul.f32 %v912, 0.3275911
  %v915 = vadd.f32 %v913, 1.0
  %v916 = vadd.f32 %v914, 1.0
  %v917 = vrcp.pop %v915
  %v918 = vrcp.pop %v916
  %v919 = vmul.f32 %v915, %v917
  %v920 = vmul.f32 %v916, %v918
  %v921 = vsub.f32 2.0, %v919
  %v922 = vsub.f32 2.0, %v920
  %v923 = vmul.f32 %v917, %v921
  %v924 = vmul.f32 %v918, %v922
  %v925 = vmul.f32 %v923, 1.0614054
  %v926 = vmul.f32 %v924, 1.0614054
  %v927 = vadd.f32 %v925, -1.4531521
  %v928 = vadd.f32 %v926, -1.4531521
  %v929 = vmul.f32 %v927, %v923
  %v930 = vmul.f32 %v928, %v924
  %v931 = vadd.f32 %v929, 1.4214138
  %v932 = vadd.f32 %v930, 1.4214138
  %v933 = vmul.f32 %v931, %v923
  %v934 = vmul.f32 %v932, %v924
  %v935 = vadd.f32 %v933, -0.28449672
  %v936 = vadd.f32 %v934, -0.28449672
  %v937 = vmul.f32 %v935, %v923
  %v938 = vmul.f32 %v936, %v924
  %v939 = vadd.f32 %v937, 0.2548296
  %v940 = vadd.f32 %v938, 0.2548296
  %v941 = vmul.f32 %v939, %v923
  %v942 = vmul.f32 %v940, %v924
  %v943 = vsub.f32 0.0, %v911
  %v944 = vsub.f32 0.0, %v912
  %v945 = vmul.f32 %v943, %v911
  %v946 = vmul.f32 %v944, %v912
  %v947 = vmul.f32 %v945, 1.442695
  %v948 = vpow.pop %v947
  %v949 = vmul.f32 %v946, 1.442695
  %v950 = vpow.pop %v949
  %v951 = vmul.f32 %v941, %v948
  %v952 = vmul.f32 %v942, %v950
  %v953 = vsub.f32 1.0, %v951
  %v954 = vsub.f32 1.0, %v952
  %vm955 = vcmp.ge.f32.partialorder %v909, 0.0
  %vm956 = vcmp.ge.f32.partialorder %v910, 0.0
  %v957 = vsub.f32 0.0, %v953
  %v958 = vsub.f32 0.0, %v954
  %v959 = vsel %vm955, %v953, %v957
  %v960 = vsel %vm956, %v954, %v958
  %v961 = vadd.f32 %v959, 1.0
  %v962 = vadd.f32 %v960, 1.0
  %v963 = vmul.f32 %v907, %v961
  %v964 = vmul.f32 %v908, %v962
  %965 = vrot.lane.b32.xlu0 %v589, 120
  %v966 = vpop.permute.xlu0 %965
  %967 = vrot.lane.b32.xlu0 %v590, 120
  %v968 = vpop.permute.xlu0 %967
  %v969 = vsel %vm110, %v966, 0
  %v971 = vsel %vm110, %v968, 0
  %v974 = vsel %vm117, %v963, 0
  %v977 = vsel %vm117, %v964, 0
  %979 = vmatprep.subr.mxu0 0.0
  %980 = vmatpush1.msra.mxu0 0.0
  %981 = vmatprep.subr.mxu0 0.0
  %982 = vmatpush1.msra.mxu0 0.0
  %983 = vmatprep.subr.mxu0 0.0
  %984 = vmatpush1.msra.mxu0 0.0
  %985 = vmatprep.subr.mxu0 0.0
  %986 = vmatpush1.msra.mxu0 0.0
  %987 = vmatprep.subr.mxu0 0.0
  %988 = vmatpush1.msra.mxu0 0.0
  %989 = vmatprep.subr.mxu0 0.0
  %990 = vmatpush1.msra.mxu0 0.0
  %991 = vmatprep.subr.mxu0 0.0
  %992 = vmatpush1.msra.mxu0 0.0
  %993 = vmatprep.subr.mxu0 0.0
  %994 = vmatpush1.msra.mxu0 0.0
  %995 = vmatprep.subr.mxu0 0.0
  %996 = vmatpush1.msra.mxu0 0.0
  %997 = vmatprep.subr.mxu0 0.0
  %998 = vmatpush1.msra.mxu0 0.0
  %999 = vmatprep.subr.mxu0 0.0
  %1000 = vmatpush1.msra.mxu0 0.0
  %1001 = vmatprep.subr.mxu0 0.0
  %1002 = vmatpush1.msra.mxu0 0.0
  %1003 = vmatprep.subr.mxu0 0.0
  %1004 = vmatpush1.msra.mxu0 0.0
  %1005 = vmatprep.subr.mxu0 0.0
  %1006 = vmatpush1.msra.mxu0 0.0
  %1007 = vmatprep.subr.mxu0 0.0
  %1008 = vmatpush1.msra.mxu0 0.0
  %1009 = vmatprep.subr.mxu0 %v977
  %1010 = vmatpush1.msra.mxu0 %v974
  %1011 = vmatprep.subr.mxu0 0.0
  %1012 = vmatpush2.msra.mxu0 0.0
  %1013 = vmatprep.subr.mxu0 0.0
  %1014 = vmatpush2.msra.mxu0 0.0
  %1015 = vmatprep.subr.mxu0 0.0
  %1016 = vmatpush2.msra.mxu0 0.0
  %1017 = vmatprep.subr.mxu0 0.0
  %1018 = vmatpush2.msra.mxu0 0.0
  %1019 = vmatprep.subr.mxu0 0.0
  %1020 = vmatpush2.msra.mxu0 0.0
  %1021 = vmatprep.subr.mxu0 0.0
  %1022 = vmatpush2.msra.mxu0 0.0
  %1023 = vmatprep.subr.mxu0 0.0
  %1024 = vmatpush2.msra.mxu0 0.0
  %1025 = vmatprep.subr.mxu0 0.0
  %1026 = vmatpush2.msra.mxu0 0.0
  %1027 = vmatprep.subr.mxu0 0.0
  %1028 = vmatpush2.msra.mxu0 0.0
  %1029 = vmatprep.subr.mxu0 0.0
  %1030 = vmatpush2.msra.mxu0 0.0
  %1031 = vmatprep.subr.mxu0 0.0
  %1032 = vmatpush2.msra.mxu0 0.0
  %1033 = vmatprep.subr.mxu0 0.0
  %1034 = vmatpush2.msra.mxu0 0.0
  %1035 = vmatprep.subr.mxu0 0.0
  %1036 = vmatpush2.msra.mxu0 0.0
  %1037 = vmatprep.subr.mxu0 0.0
  %1038 = vmatpush2.msra.mxu0 0.0
  %1039 = vmatprep.subr.mxu0 0.0
  %1040 = vmatpush2.msra.mxu0 0.0
  %1041 = vmatprep.subr.mxu0 0.0
  %1042 = vmatpush2.msra.mxu0 0.0
  %1043 = vmatprep.mubr.f32.mxu0 0.0
  %1044 = vmatmul.mubr.f32.gmra.mxu0 %v969
  %v1045 = vpop.f32.mrf.mxu0
  %v1046 = vadd.f32 0.0, %v1045
  %v1047 = vpop.f32.mrf.mxu0
  %v1048 = vadd.f32 0.0, %v1047
  %1049 = vmatprep.mubr.f32.mxu0 0.0
  %1050 = vmatmul.mubr.f32.gmra.mxu0 %v971
  %v1051 = vpop.f32.mrf.mxu0
  %v1052 = vadd.f32 0.0, %v1051
  %v1053 = vpop.f32.mrf.mxu0
  %v1054 = vadd.f32 0.0, %v1053
  %1055 = vdwg.mxu0
  %v1056 = vadd.f32 %v884, %v1046
  %v1057 = vadd.f32 %v886, %v1048
  %v1058 = vadd.f32 %v890, %v1052
  %v1059 = vadd.f32 %v892, %v1054
  %1060 = vrot.lane.b32.xlu0 %v1056, 1
  %v1061 = vpop.permute.xlu0 %1060
  %1062 = vrot.lane.b32.xlu0 %v1057, 1
  %v1063 = vpop.permute.xlu0 %1062
  %v1064 = vsel %vm203, %v1061, %v1063
  %v1065 = vsel %vm203, %v1063, %v1061
  %v1066 = vsel %vm208, 0.0, %v1065
  %v1067 = vsel %vm209, 0.0, %v1064
  %v1070 = vrot.slane %v1056, 4
  %v1071 = vrot.slane %v1057, 4
  %v1074 = vadd.f32 %v1066, %v1070
  %v1075 = vadd.f32 %v1067, %v1071
  %1076 = vrot.lane.b32.xlu0 %v1058, 127
  %v1077 = vpop.permute.xlu0 %1076
  %1078 = vrot.lane.b32.xlu0 %v1059, 127
  %v1079 = vpop.permute.xlu0 %1078
  %v1080 = vsel %vm224, %v1077, %v1079
  %v1081 = vsel %vm224, %v1079, %v1077
  %v1082 = vsel %vm229, 0.0, %v1080
  %v1083 = vsel %vm230, 0.0, %v1081
  %v1084 = vadd.f32 %v1074, %v1082
  %v1085 = vadd.f32 %v1075, %v1083
  %1086 = vset.pattern.permute.xlu0 2
  %1087 = vperm.xlu0 %1086, %v592
  %v1088 = vpop.permute.xlu0 %1087
  %v1090 = vadd.f32 %v1084, %v1088
  %v1091 = vadd.f32 %v1085, %v1088
  %v1094 = vrot.slane %v1090, 4
  %v1095 = vrot.slane %v1091, 4
  %1098 = vst [vmem:[%s3 + $0x10] sm:$0xf0] %v1094
  %1099 = vst [vmem:[%s3 + $0x18] sm:$0xf0] %v1095
  // Predicated region
  $region14: #{dense_block_pallas.1} parent=0 // pred_check
    _
  $region15: #{dense_block_pallas.1} parent=0 // pred_check_branch
    %1101 = sbr.rel (0) target = $region17
  $region16: #{dense_block_pallas.1} parent=0 // pred_region
    _
  $region17: #{dense_block_pallas.1} parent=0 // pred_fallthru
    _
  // Predicated region
  $region18: #{dense_block_pallas.1} parent=0 // pred_check
    _
  $region19: #{dense_block_pallas.1} parent=0 // pred_check_branch
    %1103 = sbr.rel (0) target = $region21
  $region20: #{dense_block_pallas.1} parent=0 // pred_region
    _
  $region21: #{dense_block_pallas.1} parent=0 // pred_fallthru
    _

</llo_original>
